<compile_context>
chip_gen: v7x
topology: tpu7x:2x2x1
jax: 0.10.0
libtpu: 0.0.40
codegen_flags: <defaults>
</compile_context>

<pallas_src>
import functools

import jax
import jax.numpy as jnp
from jax.experimental import pallas as pl
from jax.experimental.pallas import tpu as pltpu

_MiB = 1024 * 1024


# ----------------------------------------------------------------------------
# Pallas kernels
# ----------------------------------------------------------------------------

def _ca_fused_kernel(inv_hw, x_ref, w1_ref, w2_ref, o_ref):
    """Fully fused channel attention for one batch element.

    x_ref : (1, C, HW)   channels on sublanes, H*W on lanes
    w1_ref: (Cr, C)      fc1 weight (torch Conv2d C->Cr 1x1, squeezed)
    w2_ref: (C, Cr)      fc2 weight
    o_ref : (1, C, HW)   sigmoid(fc(avg) + fc(max)) * x
    """
    xc = x_ref[0]                                               # (C, HW) f32
    avg = jnp.sum(xc, axis=1, keepdims=True) * inv_hw           # (C, 1)
    mx = jnp.max(xc, axis=1, keepdims=True)                     # (C, 1)
    # fc(avg) + fc(max) with fc = w2 @ relu(w1 @ .) ; three (.,1) matmuls,
    # no lane-axis concatenate / masked column slices.
    h = (jnp.maximum(jnp.dot(w1_ref[...], avg,
                             preferred_element_type=jnp.float32), 0.0)
         + jnp.maximum(jnp.dot(w1_ref[...], mx,
                               preferred_element_type=jnp.float32), 0.0))   # (Cr,1)
    y = jnp.dot(w2_ref[...], h, preferred_element_type=jnp.float32)         # (C,1)
    scale = jax.nn.sigmoid(y)                                   # (C, 1)
    o_ref[...] = (xc * scale)[None]


def _ca_scale_kernel(inv_hw, hw_total, tile_hw, needs_mask,
                     x_ref, w1_ref, w2_ref, scale_ref, sum_sc, max_sc):
    """Pass 1 of the tiled path: accumulate sum/max over lane tiles, then the
    FC + sigmoid epilogue on the last tile.  Reduction axis (grid axis 1) must
    be innermost."""
    t = pl.program_id(1)

    @pl.when(t == 0)
    def _():
        sum_sc[...] = jnp.zeros_like(sum_sc)
        max_sc[...] = jnp.full_like(max_sc, -jnp.inf)

    xc = x_ref[0]                                               # (C, tile_hw)
    if needs_mask:
        lane = jax.lax.broadcasted_iota(jnp.int32, xc.shape, 1)
        valid = (t * tile_hw + lane) < hw_total
        xs = jnp.where(valid, xc, 0.0)
        xm = jnp.where(valid, xc, -jnp.inf)
    else:
        xs = xc
        xm = xc
    sum_sc[...] = sum_sc[...] + jnp.sum(xs, axis=1, keepdims=True)
    max_sc[...] = jnp.maximum(max_sc[...], jnp.max(xm, axis=1, keepdims=True))

    @pl.when(t == pl.num_programs(1) - 1)
    def _():
        avg = sum_sc[...] * inv_hw                              # (C, 1)
        h = (jnp.maximum(jnp.dot(w1_ref[...], avg,
                                 preferred_element_type=jnp.float32), 0.0)
             + jnp.maximum(jnp.dot(w1_ref[...], max_sc[...],
                                   preferred_element_type=jnp.float32), 0.0))
        y = jnp.dot(w2_ref[...], h, preferred_element_type=jnp.float32)     # (C,1)
        scale_ref[...] = jax.nn.sigmoid(y)[None]                # (1, C, 1)


def _ca_gate_kernel(x_ref, scale_ref, o_ref):
    """Pass 2 of the tiled path: out = scale * x for one (batch, lane tile)."""
    o_ref[...] = x_ref[...] * scale_ref[...]                    # (1,C,thw)*(1,C,1)


# ----------------------------------------------------------------------------
# Wrapper helpers
# ----------------------------------------------------------------------------

def _tpu_vmem_capacity_bytes():
    try:
        info = pltpu.get_tpu_info()
        cap = int(getattr(info, "vmem_capacity_bytes", 0))
        if cap > 0:
            return cap
    except Exception:
        pass
    return 128 * _MiB


def _budgets(vmem_limit_bytes=None):
    """Generation-aware VMEM budgets (v5e/v6e: 128 MiB VMEM, v7x-class: 64 MiB)."""
    phys = _tpu_vmem_capacity_bytes()
    small_vmem = phys <= 64 * _MiB
    if vmem_limit_bytes is None:
        vmem_limit_bytes = 48 * _MiB if small_vmem else 100 * _MiB
        vmem_limit_bytes = min(vmem_limit_bytes, int(phys * 0.8))
    # Fused path keeps a double-buffered input block + output block resident:
    # ~4x block + weights + slack must fit under the limit.
    fused_budget = max((vmem_limit_bytes - 2 * _MiB) // 4, _MiB)
    tiled_budget = 5 * _MiB if small_vmem else 8 * _MiB
    tiled_budget = min(tiled_budget, fused_budget)
    return vmem_limit_bytes, fused_budget, tiled_budget, small_vmem


def _pick_tile_hw(hw, bytes_per_col, budget_bytes):
    """Largest 128-multiple tile under the budget (or all of HW if it fits)."""
    max_cols = budget_bytes // max(bytes_per_col, 1)
    if hw <= max_cols:
        return hw
    t = (max_cols // 128) * 128
    if t == 0:
        # TODO(synk): very large C would also need channel tiling; fall back to
        # one lane group and let vmem_limit_bytes absorb it.
        t = 128
    return t


def _buffered_spec(block_shape, index_map, buffer_count):
    try:
        return pl.BlockSpec(block_shape, index_map,
                            pipeline_mode=pl.Buffered(buffer_count))
    except Exception:
        return pl.BlockSpec(block_shape, index_map)


# ----------------------------------------------------------------------------
# Wrapper
# ----------------------------------------------------------------------------

def channel_attention_pallas(x, w1, w2, *, force_tiled=False, tile_hw=None,
                             vmem_limit_bytes=None):
    """ChannelAttention forward.

    x : (N, C, H, W) float32
    w1: (Cr, C)  == torch fc[0].weight[:, :, 0, 0]   (Conv2d C->Cr, 1x1, bias=False)
    w2: (C, Cr)  == torch fc[2].weight[:, :, 0, 0]   (Conv2d Cr->C, 1x1, bias=False)
    returns sigmoid(fc(avg_pool(x)) + fc(max_pool(x))) * x, shape (N, C, H, W).
    """
    N, C, H, W = x.shape
    Cr = w1.shape[0]
    HW = H * W
    x3 = x.reshape(N, C, HW)                        # free reshape, HW on lanes
    itemsize = x3.dtype.itemsize
    block_bytes = C * HW * itemsize
    weight_bytes = 2 * Cr * C * w1.dtype.itemsize
    fc_flops = 2 * (2 * Cr * C) + 2 * Cr * C        # two fc1 + one fc2, per batch

    vmem_limit, fused_budget, tiled_budget, small_vmem = _budgets(vmem_limit_bytes)

    # v7x-class chips have 2 TensorCores; the fused grid=(N,) path leaves one
    # idle when N < 2, so prefer the two-pass path there (pass 2 is parallel
    # over both N and the lane tiles).  Pass-1 per-core partial reduce + combine
    # could also be added, but pass 2 carries 2/3 of the HBM traffic.
    prefer_tiled_small_batch = small_vmem and N < 2 and HW >= 2 * 128

    use_fused = (not force_tiled
                 and block_bytes <= fused_budget
                 and not prefer_tiled_small_batch)

    if use_fused:
        cost = pl.CostEstimate(
            flops=N * (3 * C * HW + fc_flops),
            transcendentals=N * C,
            bytes_accessed=2 * N * C * HW * itemsize + weight_bytes)
        out3 = pl.pallas_call(
            functools.partial(_ca_fused_kernel, 1.0 / HW),
            out_shape=jax.ShapeDtypeStruct((N, C, HW), x3.dtype),
            grid_spec=pltpu.PrefetchScalarGridSpec(
                num_scalar_prefetch=0,
                grid=(N,),
                in_specs=[pl.BlockSpec((1, C, HW), lambda n: (n, 0, 0)),
                          pl.BlockSpec((Cr, C), lambda n: (0, 0)),
                          pl.BlockSpec((C, Cr), lambda n: (0, 0))],
                out_specs=pl.BlockSpec((1, C, HW), lambda n: (n, 0, 0))),
            compiler_params=pltpu.CompilerParams(
                dimension_semantics=("parallel",),
                vmem_limit_bytes=vmem_limit),
            cost_estimate=cost,
        )(x3, w1, w2)
        return out3.reshape(N, C, H, W)

    # ---------------- tiled two-pass fallback (large H*W or small-N on v7x) ----
    if tile_hw is None:
        tile_hw = _pick_tile_hw(HW, C * itemsize, tiled_budget)
    assert tile_hw == HW or tile_hw % 128 == 0, tile_hw
    T = pl.cdiv(HW, tile_hw)
    needs_mask = (HW % tile_hw) != 0

    cost1 = pl.CostEstimate(
        flops=N * (2 * C * HW + fc_flops),
        transcendentals=N * C,
        bytes_accessed=N * C * HW * itemsize + N * C * 4 + weight_bytes)
    scale = pl.pallas_call(
        functools.partial(_ca_scale_kernel, 1.0 / HW, HW, tile_hw, needs_mask),
        out_shape=jax.ShapeDtypeStruct((N, C, 1), jnp.float32),
        grid_spec=pltpu.PrefetchScalarGridSpec(
            num_scalar_prefetch=0,
            grid=(N, T),   # reduction axis T must stay innermost (scratch re-init)
            in_specs=[_buffered_spec((1, C, tile_hw), lambda n, t: (n, 0, t), 3),
                      pl.BlockSpec((Cr, C), lambda n, t: (0, 0)),
                      pl.BlockSpec((C, Cr), lambda n, t: (0, 0))],
            out_specs=pl.BlockSpec((1, C, 1), lambda n, t: (n, 0, 0)),
            scratch_shapes=[pltpu.VMEM((C, 1), jnp.float32),
                            pltpu.VMEM((C, 1), jnp.float32)]),
        compiler_params=pltpu.CompilerParams(
            dimension_semantics=("parallel", "arbitrary"),
            vmem_limit_bytes=vmem_limit),
        cost_estimate=cost1,
    )(x3, w1, w2)

    cost2 = pl.CostEstimate(
        flops=N * C * HW,
        transcendentals=0,
        bytes_accessed=2 * N * C * HW * itemsize + N * C * 4)
    out3 = pl.pallas_call(
        _ca_gate_kernel,
        out_shape=jax.ShapeDtypeStruct((N, C, HW), x3.dtype),
        grid_spec=pltpu.PrefetchScalarGridSpec(
            num_scalar_prefetch=0,
            grid=(N, T),
            in_specs=[pl.BlockSpec((1, C, tile_hw), lambda n, t: (n, 0, t)),
                      pl.BlockSpec((1, C, 1), lambda n, t: (n, 0, 0))],
            out_specs=pl.BlockSpec((1, C, tile_hw), lambda n, t: (n, 0, t))),
        compiler_params=pltpu.CompilerParams(
            dimension_semantics=("parallel", "parallel"),
            vmem_limit_bytes=vmem_limit),
        cost_estimate=cost2,
    )(x3, scale)
    return out3.reshape(N, C, H, W)


# ----------------------------------------------------------------------------
# Pure-JAX reference (mirrors the PyTorch module, f32)
# ----------------------------------------------------------------------------

def channel_attention_ref(x, w1, w2):
    avg = jnp.mean(x, axis=(2, 3))                  # (N, C)
    mx = jnp.max(x, axis=(2, 3))                    # (N, C)

    def fc(v):
        h = jnp.maximum(
            jnp.dot(v, w1.T, precision=jax.lax.Precision.HIGHEST), 0.0)
        return jnp.dot(h, w2.T, precision=jax.lax.Precision.HIGHEST)

    scale = jax.nn.sigmoid(fc(avg) + fc(mx))        # (N, C)
    return x * scale[:, :, None, None]


# ----------------------------------------------------------------------------
# Main
# ----------------------------------------------------------------------------

if __name__ == "__main__":
    key = jax.random.PRNGKey(0)
    kx, kw1, kw2, kx2 = jax.random.split(key, 4)

    # Primary shapes.
    N, C, H, W = 2, 256, 16, 16
    reduction = 16
    Cr = C // reduction

    x = jax.random.normal(kx, (N, C, H, W), jnp.float32)

    # PyTorch Conv2d default init: U(-1/sqrt(fan_in), 1/sqrt(fan_in)), bias=False.
    b1 = 1.0 / (C ** 0.5)
    w1 = jax.random.uniform(kw1, (Cr, C), jnp.float32, -b1, b1)   # fc1 weight
    b2 = 1.0 / (Cr ** 0.5)
    w2 = jax.random.uniform(kw2, (C, Cr), jnp.float32, -b2, b2)   # fc2 weight

    ref = channel_attention_ref(x, w1, w2)

    # Fused single-kernel path (default for this size).
    out_fused = jax.block_until_ready(channel_attention_pallas(x, w1, w2))
    assert out_fused.shape == (N, C, H, W), out_fused.shape
    assert bool(jnp.all(jnp.isfinite(out_fused)))
    assert bool(jnp.allclose(out_fused, ref, rtol=2e-3, atol=2e-3)), \
        float(jnp.max(jnp.abs(out_fused - ref)))

    # Tiled two-pass fallback (even division: HW=256, tile_hw=128 -> 2 tiles).
    out_tiled = jax.block_until_ready(
        channel_attention_pallas(x, w1, w2, force_tiled=True, tile_hw=128))
    assert bool(jnp.allclose(out_tiled, ref, rtol=2e-3, atol=2e-3)), \
        float(jnp.max(jnp.abs(out_tiled - ref)))

    # Tiled path with a masked remainder tile (HW=144 not a multiple of 128).
    C2, Cr2 = 64, 64 // reduction
    x2 = jax.random.normal(kx2, (2, C2, 12, 12), jnp.float32)
    w1b = jax.random.uniform(kw1, (Cr2, C2), jnp.float32, -1.0 / C2 ** 0.5, 1.0 / C2 ** 0.5)
    w2b = jax.random.uniform(kw2, (C2, Cr2), jnp.float32, -1.0 / Cr2 ** 0.5, 1.0 / Cr2 ** 0.5)
    out_mask = jax.block_until_ready(
        channel_attention_pallas(x2, w1b, w2b, force_tiled=True, tile_hw=128))
    ref2 = channel_attention_ref(x2, w1b, w2b)
    assert bool(jnp.allclose(out_mask, ref2, rtol=2e-3, atol=2e-3)), \
        float(jnp.max(jnp.abs(out_mask - ref2)))

    print("KERNEL_OK")
</pallas_src>

<mosaic_0001>
module attributes {stable_mosaic.version = 11 : i64} {
  func.func @_ca_fused_kernel(%arg0: i32, %arg1: memref<1x256x256xf32, #tpu.memory_space<vmem>>, %arg2: memref<16x256xf32, #tpu.memory_space<vmem>>, %arg3: memref<256x16xf32, #tpu.memory_space<vmem>>, %arg4: memref<1x256x256xf32, #tpu.memory_space<vmem>>) attributes {dimension_semantics = [#tpu.dimension_semantics<parallel>], iteration_bounds = array<i64: 2>, scalar_prefetch = 0 : i64, scratch_operands = 0 : i64, tpu.core_type = #tpu.core_type<tc>, window_params = [{transform_indices = @transform_0, window_bounds = array<i64: 1, 256, 256>}, {pipeline_mode = #tpu.pipeline_mode<synchronous>, transform_indices = @transform_1, window_bounds = array<i64: 16, 256>}, {pipeline_mode = #tpu.pipeline_mode<synchronous>, transform_indices = @transform_2, window_bounds = array<i64: 256, 16>}, {transform_indices = @transform_3, window_bounds = array<i64: 1, 256, 256>}]} {
    %c0 = arith.constant 0 : index
    %c0_0 = arith.constant 0 : index
    %c0_1 = arith.constant 0 : index
    %0 = vector.load %arg1[%c0, %c0_0, %c0_1] : memref<1x256x256xf32, #tpu.memory_space<vmem>>, vector<1x256x256xf32>
    %1 = vector.shape_cast %0 : vector<1x256x256xf32> to vector<256x256xf32>
    %cst = arith.constant dense<0.000000e+00> : vector<256xf32>
    %2 = vector.multi_reduction <add>, %1, %cst [1] : vector<256x256xf32> to vector<256xf32>
    %3 = vector.shape_cast %2 : vector<256xf32> to vector<256x1xf32>
    %cst_2 = arith.constant 3.906250e-03 : f32
    %4 = vector.broadcast %cst_2 : f32 to vector<256x1xf32>
    %5 = arith.mulf %3, %4 : vector<256x1xf32>
    %cst_3 = arith.constant dense<0xFF800000> : vector<256xf32>
    %6 = vector.multi_reduction <maximumf>, %1, %cst_3 [1] : vector<256x256xf32> to vector<256xf32>
    %7 = vector.shape_cast %6 : vector<256xf32> to vector<256x1xf32>
    %c0_4 = arith.constant 0 : index
    %c0_5 = arith.constant 0 : index
    %8 = vector.load %arg2[%c0_4, %c0_5] : memref<16x256xf32, #tpu.memory_space<vmem>>, vector<16x256xf32>
    %cst_6 = arith.constant dense<0.000000e+00> : vector<16x1xf32>
    %9 = tpu.matmul %8, %5, %cst_6 {dimension_numbers = #tpu.dot_dimension_numbers<[1], [0], [0], [1], [0, 0, 1, 1], [], []>} : vector<16x256xf32>, vector<256x1xf32>, vector<16x1xf32> -> vector<16x1xf32>
    %cst_7 = arith.constant 0.000000e+00 : f32
    %10 = vector.broadcast %cst_7 : f32 to vector<16x1xf32>
    %11 = arith.maximumf %9, %10 : vector<16x1xf32>
    %c0_8 = arith.constant 0 : index
    %c0_9 = arith.constant 0 : index
    %12 = vector.load %arg2[%c0_8, %c0_9] : memref<16x256xf32, #tpu.memory_space<vmem>>, vector<16x256xf32>
    %cst_10 = arith.constant dense<0.000000e+00> : vector<16x1xf32>
    %13 = tpu.matmul %12, %7, %cst_10 {dimension_numbers = #tpu.dot_dimension_numbers<[1], [0], [0], [1], [0, 0, 1, 1], [], []>} : vector<16x256xf32>, vector<256x1xf32>, vector<16x1xf32> -> vector<16x1xf32>
    %cst_11 = arith.constant 0.000000e+00 : f32
    %14 = vector.broadcast %cst_11 : f32 to vector<16x1xf32>
    %15 = arith.maximumf %13, %14 : vector<16x1xf32>
    %16 = arith.addf %11, %15 : vector<16x1xf32>
    %c0_12 = arith.constant 0 : index
    %c0_13 = arith.constant 0 : index
    %17 = vector.load %arg3[%c0_12, %c0_13] : memref<256x16xf32, #tpu.memory_space<vmem>>, vector<256x16xf32>
    %cst_14 = arith.constant dense<0.000000e+00> : vector<256x1xf32>
    %18 = tpu.matmul %17, %16, %cst_14 {dimension_numbers = #tpu.dot_dimension_numbers<[1], [0], [0], [1], [0, 0, 1, 1], [], []>} : vector<256x16xf32>, vector<16x1xf32>, vector<256x1xf32> -> vector<256x1xf32>
    %19 = arith.negf %18 : vector<256x1xf32>
    %20 = math.exp %19 : vector<256x1xf32>
    %cst_15 = arith.constant 1.000000e+00 : f32
    %21 = vector.broadcast %cst_15 : f32 to vector<256x1xf32>
    %22 = arith.addf %21, %20 : vector<256x1xf32>
    %23 = arith.divf %21, %22 : vector<256x1xf32>
    %24 = vector.broadcast %23 : vector<256x1xf32> to vector<256x256xf32>
    %25 = arith.mulf %1, %24 : vector<256x256xf32>
    %26 = vector.shape_cast %25 : vector<256x256xf32> to vector<1x256x256xf32>
    %c0_16 = arith.constant 0 : index
    %c0_17 = arith.constant 0 : index
    %c0_18 = arith.constant 0 : index
    %27 = vector.load %arg4[%c0_16, %c0_17, %c0_18] : memref<1x256x256xf32, #tpu.memory_space<vmem>>, vector<1x256x256xf32>
    tpu.vector_store %arg4[%c0_16, %c0_17, %c0_18], %26 {strides = array<i32>} : memref<1x256x256xf32, #tpu.memory_space<vmem>>, vector<1x256x256xf32>,
    return
  }
  func.func @transform_0(%arg0: i32) -> (i32, i32, i32) {
    %c0_i32 = arith.constant 0 : i32
    %c0_i32_0 = arith.constant 0 : i32
    %c0_i32_1 = arith.constant 0 : i32
    return %arg0, %c0_i32, %c0_i32_0 : i32, i32, i32
  }
  func.func @transform_1(%arg0: i32) -> (i32, i32) {
    %c0_i32 = arith.constant 0 : i32
    %c0_i32_0 = arith.constant 0 : i32
    %c0_i32_1 = arith.constant 0 : i32
    return %c0_i32, %c0_i32_0 : i32, i32
  }
  func.func @transform_2(%arg0: i32) -> (i32, i32) {
    %c0_i32 = arith.constant 0 : i32
    %c0_i32_0 = arith.constant 0 : i32
    %c0_i32_1 = arith.constant 0 : i32
    return %c0_i32, %c0_i32_0 : i32, i32
  }
  func.func @transform_3(%arg0: i32) -> (i32, i32, i32) {
    %c0_i32 = arith.constant 0 : i32
    %c0_i32_0 = arith.constant 0 : i32
    %c0_i32_1 = arith.constant 0 : i32
    return %arg0, %c0_i32, %c0_i32_0 : i32, i32, i32
  }
}

</mosaic_0001>

<llo_original>
// kernel: tpu_custom_call.1
$region0: #{tpu_custom_call.1}
  #allocation0 [shape = 'u32[]', space=smem, size = 0x4, offset = 0x4, fixed_abs, tag = 'smem constant byte address 0x4 - core index']
  #allocation1 [shape = 'u32[144,128]{1,0:T(1,128)}', space=vmem, size = 0x12000, scoped, tag = 'internal scratch']
  %s0 = inlined_call_operand.hbm [shape: f32[2,256,256], index: 0, kind: input, shape index: {}]
  %s1 = inlined_call_operand.hbm [shape: f32[16,256], index: 1, kind: input, shape index: {}]
  %s2 = inlined_call_operand.hbm [shape: f32[256,16], index: 2, kind: input, shape index: {}]
  %s3 = inlined_call_operand.hbm [shape: f32[2,256,256], index: 3, kind: output, shape index: {}]
  %s4 = sld [smem:[#allocation0]]
  $region57: #{tpu_custom_call.1} parent=0
    _
  %s6 = ssub.s32 1, %s4
  %s7 = scalar_select 0, %s6, %s4
  $region1: #{tpu_custom_call.1} parent=0
    #allocation2 [shape = 'u8[524288]{0}', space=vmem, size = 0x80000, scoped, tag = 'input window, operand 0']
    #allocation3 [shape = 's32[2]{0}', space=sflag, size = 0x8, scoped, tag = 'scoped memory for tpu_custom_call.1']
    #allocation4 [shape = 's32[2]{0}', space=sflag, size = 0x8, scoped, tag = 'scoped memory for tpu_custom_call.1']
    #allocation5 [shape = 'u8[16384]{0}', space=vmem, size = 0x4000, scoped, tag = 'input window, operand 1, single buffered']
    #allocation6 [shape = 's32[1]{0}', space=sflag, size = 0x4, scoped, tag = 'scoped memory for tpu_custom_call.1']
    #allocation7 [shape = 'u8[131072]{0}', space=vmem, size = 0x20000, scoped, tag = 'input window, operand 2, single buffered']
    #allocation8 [shape = 'u8[524288]{0}', space=vmem, size = 0x80000, scoped, tag = 'output window, operand 0']
    %8 = vsyncpa [#allocation3], 0
    %s9 = scalar_lea.sflag [#allocation3], 1
    %10 = vsyncpa %s9, 0
    %11 = vsyncpa [#allocation6], 0
    %12 = vsyncpa [#allocation4], 0
    %s13 = scalar_lea.sflag [#allocation4], 1
    %14 = vsyncpa %s13, 0
    loop: start=0, step=1, limit=4
    $region2: #{tpu_custom_call.1} parent=1 // loop_pre_header
      _
    $region3: #{tpu_custom_call.1} parent=1 // loop_header
      %s16 = sphi 0, %s20
      %p17 = scmp.ge.s32.totalorder %s16, 4
      %s26 = sphi 0, %s28
      %s29 = sphi 0, %s26
      %s30 = sphi 0, %s29
      %s46 = sphi 0, %s30
      %s50 = sphi 0, %s50
      %s52 = sphi 0, %s50
      %s53 = sphi 0, %s52
      %s67 = sphi 0, %s53
      %s71 = sphi 0, %s71
      %s73 = sphi 0, %s71
      %s74 = sphi 0, %s73
      %s88 = sphi 0, %s74
      %s94 = sphi 0, %s96
      %s97 = sphi 0, %s94
      %s98 = sphi 0, %s97
      %s114 = sphi 0, %s98
    $region4: #{tpu_custom_call.1} parent=1 // loop_header_branch
      %19 = sbr.rel (%p17) target = $region8
    $region5: #{tpu_custom_call.1} parent=1 // loop_body
      %s21 = ssub.s32 %s16, 1
      %s22 = ssub.s32 %s16, 2
      %s23 = sadd.s32 %s16, 1
      %s24 = ssub.s32 %s16, %s23
      %p25 = scmp.eq.s32.totalorder %s24, 0
      %s27 = sadd.s32 %s26, 1
      %s28 = scalar_select %p25, %s26, %s27
      %p31 = pneg %p25
      %p32 = scmp.eq.s32.totalorder %s16, 1
      %p33 = por %p31, %p32
      %p34 = scmp.ne.s32.totalorder %s26, %s29
      %p35 = scmp.eq.s32.totalorder %s16, 0
      %p36 = por %p34, %p35
      %p37 = scmp.ne.s32.totalorder %s26, %s29
      %p38 = scmp.eq.s32.totalorder %s21, 1
      %p39 = por %p37, %p38
      %p40 = scmp.ne.s32.totalorder %s29, %s30
      %p41 = scmp.eq.s32.totalorder %s21, 0
      %p42 = por %p40, %p41
      %p43 = scmp.ne.s32.totalorder %s29, %s30
      %p44 = scmp.eq.s32.totalorder %s22, 1
      %p45 = por %p43, %p44
      %p47 = scmp.ne.s32.totalorder %s30, %s46
      %p48 = scmp.eq.s32.totalorder %s22, 0
      %p49 = por %p47, %p48
      %s51 = sadd.s32 %s50, 1
      %p54 = scmp.eq.s32.totalorder %s16, 1
      %p55 = scmp.ne.s32.totalorder %s50, %s52
      %p56 = scmp.eq.s32.totalorder %s16, 0
      %p57 = por %p55, %p56
      %p58 = scmp.ne.s32.totalorder %s50, %s52
      %p59 = scmp.eq.s32.totalorder %s21, 1
      %p60 = por %p58, %p59
      %p61 = scmp.ne.s32.totalorder %s52, %s53
      %p62 = scmp.eq.s32.totalorder %s21, 0
      %p63 = por %p61, %p62
      %p64 = scmp.ne.s32.totalorder %s52, %s53
      %p65 = scmp.eq.s32.totalorder %s22, 1
      %p66 = por %p64, %p65
      %p68 = scmp.ne.s32.totalorder %s53, %s67
      %p69 = scmp.eq.s32.totalorder %s22, 0
      %p70 = por %p68, %p69
      %s72 = sadd.s32 %s71, 1
      %p75 = scmp.eq.s32.totalorder %s16, 1
      %p76 = scmp.ne.s32.totalorder %s71, %s73
      %p77 = scmp.eq.s32.totalorder %s16, 0
      %p78 = por %p76, %p77
      %p79 = scmp.ne.s32.totalorder %s71, %s73
      %p80 = scmp.eq.s32.totalorder %s21, 1
      %p81 = por %p79, %p80
      %p82 = scmp.ne.s32.totalorder %s73, %s74
      %p83 = scmp.eq.s32.totalorder %s21, 0
      %p84 = por %p82, %p83
      %p85 = scmp.ne.s32.totalorder %s73, %s74
      %p86 = scmp.eq.s32.totalorder %s22, 1
      %p87 = por %p85, %p86
      %p89 = scmp.ne.s32.totalorder %s74, %s88
      %p90 = scmp.eq.s32.totalorder %s22, 0
      %p91 = por %p89, %p90
      %s92 = ssub.s32 %s16, %s23
      %p93 = scmp.eq.s32.totalorder %s92, 0
      %s95 = sadd.s32 %s94, 1
      %s96 = scalar_select %p93, %s94, %s95
      %p99 = pneg %p93
      %p100 = scmp.eq.s32.totalorder %s16, 1
      %p101 = por %p99, %p100
      %p102 = scmp.ne.s32.totalorder %s94, %s97
      %p103 = scmp.eq.s32.totalorder %s16, 0
      %p104 = por %p102, %p103
      %p105 = scmp.ne.s32.totalorder %s94, %s97
      %p106 = scmp.eq.s32.totalorder %s21, 1
      %p107 = por %p105, %p106
      %p108 = scmp.ne.s32.totalorder %s97, %s98
      %p109 = scmp.eq.s32.totalorder %s21, 0
      %p110 = por %p108, %p109
      %p111 = scmp.ne.s32.totalorder %s97, %s98
      %p112 = scmp.eq.s32.totalorder %s22, 1
      %p113 = por %p111, %p112
      %p115 = scmp.ne.s32.totalorder %s98, %s114
      %p116 = scmp.eq.s32.totalorder %s22, 0
      %p117 = por %p115, %p116
      %p118 = scmp.le.s32.totalorder 1, %s16
      %p119 = scmp.lt.s32.totalorder %s16, 3
      %p120 = pnand %p118, %p119
      %p121 = pneg %p120
      // Predicated region
      $region9: #{tpu_custom_call.1} parent=5 // pred_check
        _
      $region10: #{tpu_custom_call.1} parent=5 // pred_check_branch
        %123 = sbr.rel (%p120) target = $region12
      $region11: #{tpu_custom_call.1} parent=5 // pred_region
        %s124 = ssub.s32 %s16, 1
        // Predicated region
        $region13: #{tpu_custom_call.1} parent=11 // pred_check
          %p125 = pneg %p63
        $region14: #{tpu_custom_call.1} parent=11 // pred_check_branch
          %127 = sbr.rel (%p125) target = $region16
        $region15: #{tpu_custom_call.1} parent=11 // pred_region
          %s129 = ssub.s32 512, 512
          %130 = vsyncadd [#allocation6], %s129
          %s131 = sshll.u32 [#allocation5], 4
          %s132 = int_to_ptr.vmem [resolvable:$true] %s131
          %137 = dma.hbm_to_vmem [thread:$0]  %s1, 512, %s132, [#allocation6], 256, 256, 16
        $region16: #{tpu_custom_call.1} parent=11 // pred_fallthru
          _
        // Predicated region
        $region17: #{tpu_custom_call.1} parent=11 // pred_check
          %p138 = pneg %p84
        $region18: #{tpu_custom_call.1} parent=11 // pred_check_branch
          %140 = sbr.rel (%p138) target = $region20
        $region19: #{tpu_custom_call.1} parent=11 // pred_region
          %s142 = ssub.s32 4096, 4096
          %143 = vsyncadd [#allocation6], %s142
          %s144 = sshll.u32 [#allocation7], 4
          %s145 = int_to_ptr.vmem [resolvable:$true] %s144
          %150 = dma.hbm_to_vmem [thread:$0]  %s2, 4096, %s145, [#allocation6], 128, 128, 8
        $region20: #{tpu_custom_call.1} parent=11 // pred_fallthru
          _
      $region12: #{tpu_custom_call.1} parent=5 // pred_fallthru
        _
      %p151 = scmp.lt.s32.totalorder %s16, 2
      // Predicated region
      $region21: #{tpu_custom_call.1} parent=5 // pred_check
        %p152 = pneg %p151
      $region22: #{tpu_custom_call.1} parent=5 // pred_check_branch
        %154 = sbr.rel (%p152) target = $region24
      $region23: #{tpu_custom_call.1} parent=5 // pred_region
        // Predicated region
        $region25: #{tpu_custom_call.1} parent=23 // pred_check
          %p155 = pneg %p36
        $region26: #{tpu_custom_call.1} parent=23 // pred_check_branch
          %157 = sbr.rel (%p155) target = $region28
        $region27: #{tpu_custom_call.1} parent=23 // pred_region
          %s158 = sand.u32 %s26, 1
          %s159 = scalar_lea.sflag [#allocation3], %s158
          %s160 = sand.u32 %s26, 1
          %s161 = smul.addr %s160, 512
          %s162 = scalar_lea.vmem [#allocation2], %s161
          %s164 = ssub.s32 8192, 8192
          %165 = vsyncadd %s159, %s164
          %s166 = smul.addr %s16, 64
          %s167 = smul.addr %s166, 128
          %s168 = scalar_lea.hbm %s0, %s167
          %s169 = sshll.u32 %s162, 4
          %s170 = int_to_ptr.vmem [resolvable:$true] %s169
          %175 = dma.hbm_to_vmem [thread:$0]  %s168, 8192, %s170, %s159, 256, 256, 16
        $region28: #{tpu_custom_call.1} parent=23 // pred_fallthru
          _
      $region24: #{tpu_custom_call.1} parent=5 // pred_fallthru
        _
      %p176 = scmp.le.s32.totalorder 1, %s16
      %p177 = scmp.lt.s32.totalorder %s16, 3
      %p178 = pnand %p176, %p177
      %p179 = pneg %p178
      // Predicated region
      $region29: #{tpu_custom_call.1} parent=5 // pred_check
        _
      $region30: #{tpu_custom_call.1} parent=5 // pred_check_branch
        %181 = sbr.rel (%p178) target = $region32
      $region31: #{tpu_custom_call.1} parent=5 // pred_region
        %s182 = ssub.s32 %s16, 1
        %s183 = sand.u32 %s29, 1
        %s184 = scalar_lea.sflag [#allocation3], %s183
        %s185 = sand.u32 %s29, 1
        %s186 = smul.addr %s185, 512
        %s187 = scalar_lea.vmem [#allocation2], %s186
        // Predicated region
        $region33: #{tpu_custom_call.1} parent=31 // pred_check
          %p188 = pneg %p42
        $region34: #{tpu_custom_call.1} parent=31 // pred_check_branch
          %190 = sbr.rel (%p188) target = $region36
        $region35: #{tpu_custom_call.1} parent=31 // pred_region
          %191 = dma.done %s184, 8192
        $region36: #{tpu_custom_call.1} parent=31 // pred_fallthru
          _
        // Predicated region
        $region37: #{tpu_custom_call.1} parent=31 // pred_check
          %p192 = pneg %p63
        $region38: #{tpu_custom_call.1} parent=31 // pred_check_branch
          %194 = sbr.rel (%p192) target = $region40
        $region39: #{tpu_custom_call.1} parent=31 // pred_region
          %195 = dma.done [#allocation6], 512
        $region40: #{tpu_custom_call.1} parent=31 // pred_fallthru
          _
        // Predicated region
        $region41: #{tpu_custom_call.1} parent=31 // pred_check
          %p196 = pneg %p84
        $region42: #{tpu_custom_call.1} parent=31 // pred_check_branch
          %198 = sbr.rel (%p196) target = $region44
        $region43: #{tpu_custom_call.1} parent=31 // pred_region
          %199 = dma.done [#allocation6], 4096
        $region44: #{tpu_custom_call.1} parent=31 // pred_fallthru
          _
        %s200 = sand.u32 %s29, 1
        %s201 = scalar_lea.sflag [#allocation3], %s200
        %s202 = sand.u32 %s29, 1
        %s203 = smul.addr %s202, 512
        %s204 = scalar_lea.vmem [#allocation2], %s203
        %p205 = pneg %p42
        %p206 = pneg %p39
        %p207 = pneg %p63
        %p208 = pneg %p60
        %p209 = pneg %p84
        %p210 = pneg %p81
        %p211 = pneg %p110
        %p212 = pneg %p107
        %s213 = sand.u32 %s97, 1
        %s214 = scalar_lea.sflag [#allocation4], %s213
        %s215 = sand.u32 %s97, 1
        %s216 = smul.addr %s215, 512
        %s217 = scalar_lea.vmem [#allocation8], %s216
        %v218 = vld [vmem:[%s187] sm:$0xff]
        %v219 = vld [vmem:[%s187 + $0x8] sm:$0xff]
        %v220 = vld [vmem:[%s187 + $0x10] sm:$0xff]
        %v221 = vld [vmem:[%s187 + $0x18] sm:$0xff]
        %v222 = vld [vmem:[%s187 + $0x20] sm:$0xff]
        %v223 = vld [vmem:[%s187 + $0x28] sm:$0xff]
        %v224 = vld [vmem:[%s187 + $0x30] sm:$0xff]
        %v225 = vld [vmem:[%s187 + $0x38] sm:$0xff]
        %v226 = vld [vmem:[%s187 + $0x40] sm:$0xff]
        %v227 = vld [vmem:[%s187 + $0x48] sm:$0xff]
        %v228 = vld [vmem:[%s187 + $0x50] sm:$0xff]
        %v229 = vld [vmem:[%s187 + $0x58] sm:$0xff]
        %v230 = vld [vmem:[%s187 + $0x60] sm:$0xff]
        %v231 = vld [vmem:[%s187 + $0x68] sm:$0xff]
        %v232 = vld [vmem:[%s187 + $0x70] sm:$0xff]
        %v233 = vld [vmem:[%s187 + $0x78] sm:$0xff]
        %v234 = vld [vmem:[%s187 + $0x80] sm:$0xff]
        %v235 = vld [vmem:[%s187 + $0x88] sm:$0xff]
        %v236 = vld [vmem:[%s187 + $0x90] sm:$0xff]
        %v237 = vld [vmem:[%s187 + $0x98] sm:$0xff]
        %v238 = vld [vmem:[%s187 + $0xa0] sm:$0xff]
        %v239 = vld [vmem:[%s187 + $0xa8] sm:$0xff]
        %v240 = vld [vmem:[%s187 + $0xb0] sm:$0xff]
        %v241 = vld [vmem:[%s187 + $0xb8] sm:$0xff]
        %v242 = vld [vmem:[%s187 + $0xc0] sm:$0xff]
        %v243 = vld [vmem:[%s187 + $0xc8] sm:$0xff]
        %v244 = vld [vmem:[%s187 + $0xd0] sm:$0xff]
        %v245 = vld [vmem:[%s187 + $0xd8] sm:$0xff]
        %v246 = vld [vmem:[%s187 + $0xe0] sm:$0xff]
        %v247 = vld [vmem:[%s187 + $0xe8] sm:$0xff]
        %v248 = vld [vmem:[%s187 + $0xf0] sm:$0xff]
        %v249 = vld [vmem:[%s187 + $0xf8] sm:$0xff]
        %v250 = vld [vmem:[%s187 + $0x100] sm:$0xff]
        %v251 = vld [vmem:[%s187 + $0x108] sm:$0xff]
        %v252 = vld [vmem:[%s187 + $0x110] sm:$0xff]
        %v253 = vld [vmem:[%s187 + $0x118] sm:$0xff]
        %v254 = vld [vmem:[%s187 + $0x120] sm:$0xff]
        %v255 = vld [vmem:[%s187 + $0x128] sm:$0xff]
        %v256 = vld [vmem:[%s187 + $0x130] sm:$0xff]
        %v257 = vld [vmem:[%s187 + $0x138] sm:$0xff]
        %v258 = vld [vmem:[%s187 + $0x140] sm:$0xff]
        %v259 = vld [vmem:[%s187 + $0x148] sm:$0xff]
        %v260 = vld [vmem:[%s187 + $0x150] sm:$0xff]
        %v261 = vld [vmem:[%s187 + $0x158] sm:$0xff]
        %v262 = vld [vmem:[%s187 + $0x160] sm:$0xff]
        %v263 = vld [vmem:[%s187 + $0x168] sm:$0xff]
        %v264 = vld [vmem:[%s187 + $0x170] sm:$0xff]
        %v265 = vld [vmem:[%s187 + $0x178] sm:$0xff]
        %v266 = vld [vmem:[%s187 + $0x180] sm:$0xff]
        %v267 = vld [vmem:[%s187 + $0x188] sm:$0xff]
        %v268 = vld [vmem:[%s187 + $0x190] sm:$0xff]
        %v269 = vld [vmem:[%s187 + $0x198] sm:$0xff]
        %v270 = vld [vmem:[%s187 + $0x1a0] sm:$0xff]
        %v271 = vld [vmem:[%s187 + $0x1a8] sm:$0xff]
        %v272 = vld [vmem:[%s187 + $0x1b0] sm:$0xff]
        %v273 = vld [vmem:[%s187 + $0x1b8] sm:$0xff]
        %v274 = vld [vmem:[%s187 + $0x1c0] sm:$0xff]
        %v275 = vld [vmem:[%s187 + $0x1c8] sm:$0xff]
        %v276 = vld [vmem:[%s187 + $0x1d0] sm:$0xff]
        %v277 = vld [vmem:[%s187 + $0x1d8] sm:$0xff]
        %v278 = vld [vmem:[%s187 + $0x1e0] sm:$0xff]
        %v279 = vld [vmem:[%s187 + $0x1e8] sm:$0xff]
        %v280 = vld [vmem:[%s187 + $0x1f0] sm:$0xff]
        %v281 = vld [vmem:[%s187 + $0x1f8] sm:$0xff]
        %v282 = vadd.f32 %v218, %v219
        %283 = vadd.xlane.f32.xlu0 %v282
        %v284 = vpop.xlane.xlu0 %283
        %v285 = vadd.f32 %v220, %v221
        %286 = vadd.xlane.f32.xlu0 %v285
        %v287 = vpop.xlane.xlu0 %286
        %v288 = vadd.f32 %v222, %v223
        %289 = vadd.xlane.f32.xlu0 %v288
        %v290 = vpop.xlane.xlu0 %289
        %v291 = vadd.f32 %v224, %v225
        %292 = vadd.xlane.f32.xlu0 %v291
        %v293 = vpop.xlane.xlu0 %292
        %v294 = vadd.f32 %v226, %v227
        %295 = vadd.xlane.f32.xlu0 %v294
        %v296 = vpop.xlane.xlu0 %295
        %v297 = vadd.f32 %v228, %v229
        %298 = vadd.xlane.f32.xlu0 %v297
        %v299 = vpop.xlane.xlu0 %298
        %v300 = vadd.f32 %v230, %v231
        %301 = vadd.xlane.f32.xlu0 %v300
        %v302 = vpop.xlane.xlu0 %301
        %v303 = vadd.f32 %v232, %v233
        %304 = vadd.xlane.f32.xlu0 %v303
        %v305 = vpop.xlane.xlu0 %304
        %v306 = vadd.f32 %v234, %v235
        %307 = vadd.xlane.f32.xlu0 %v306
        %v308 = vpop.xlane.xlu0 %307
        %v309 = vadd.f32 %v236, %v237
        %310 = vadd.xlane.f32.xlu0 %v309
        %v311 = vpop.xlane.xlu0 %310
        %v312 = vadd.f32 %v238, %v239
        %313 = vadd.xlane.f32.xlu0 %v312
        %v314 = vpop.xlane.xlu0 %313
        %v315 = vadd.f32 %v240, %v241
        %316 = vadd.xlane.f32.xlu0 %v315
        %v317 = vpop.xlane.xlu0 %316
        %v318 = vadd.f32 %v242, %v243
        %319 = vadd.xlane.f32.xlu0 %v318
        %v320 = vpop.xlane.xlu0 %319
        %v321 = vadd.f32 %v244, %v245
        %322 = vadd.xlane.f32.xlu0 %v321
        %v323 = vpop.xlane.xlu0 %322
        %v324 = vadd.f32 %v246, %v247
        %325 = vadd.xlane.f32.xlu0 %v324
        %v326 = vpop.xlane.xlu0 %325
        %v327 = vadd.f32 %v248, %v249
        %328 = vadd.xlane.f32.xlu0 %v327
        %v329 = vpop.xlane.xlu0 %328
        %v330 = vadd.f32 %v250, %v251
        %331 = vadd.xlane.f32.xlu0 %v330
        %v332 = vpop.xlane.xlu0 %331
        %v333 = vadd.f32 %v252, %v253
        %334 = vadd.xlane.f32.xlu0 %v333
        %v335 = vpop.xlane.xlu0 %334
        %v336 = vadd.f32 %v254, %v255
        %337 = vadd.xlane.f32.xlu0 %v336
        %v338 = vpop.xlane.xlu0 %337
        %v339 = vadd.f32 %v256, %v257
        %340 = vadd.xlane.f32.xlu0 %v339
        %v341 = vpop.xlane.xlu0 %340
        %v342 = vadd.f32 %v258, %v259
        %343 = vadd.xlane.f32.xlu0 %v342
        %v344 = vpop.xlane.xlu0 %343
        %v345 = vadd.f32 %v260, %v261
        %346 = vadd.xlane.f32.xlu0 %v345
        %v347 = vpop.xlane.xlu0 %346
        %v348 = vadd.f32 %v262, %v263
        %349 = vadd.xlane.f32.xlu0 %v348
        %v350 = vpop.xlane.xlu0 %349
        %v351 = vadd.f32 %v264, %v265
        %352 = vadd.xlane.f32.xlu0 %v351
        %v353 = vpop.xlane.xlu0 %352
        %v354 = vadd.f32 %v266, %v267
        %355 = vadd.xlane.f32.xlu0 %v354
        %v356 = vpop.xlane.xlu0 %355
        %v357 = vadd.f32 %v268, %v269
        %358 = vadd.xlane.f32.xlu0 %v357
        %v359 = vpop.xlane.xlu0 %358
        %v360 = vadd.f32 %v270, %v271
        %361 = vadd.xlane.f32.xlu0 %v360
        %v362 = vpop.xlane.xlu0 %361
        %v363 = vadd.f32 %v272, %v273
        %364 = vadd.xlane.f32.xlu0 %v363
        %v365 = vpop.xlane.xlu0 %364
        %v366 = vadd.f32 %v274, %v275
        %367 = vadd.xlane.f32.xlu0 %v366
        %v368 = vpop.xlane.xlu0 %367
        %v369 = vadd.f32 %v276, %v277
        %370 = vadd.xlane.f32.xlu0 %v369
        %v371 = vpop.xlane.xlu0 %370
        %v372 = vadd.f32 %v278, %v279
        %373 = vadd.xlane.f32.xlu0 %v372
        %v374 = vpop.xlane.xlu0 %373
        %v375 = vadd.f32 %v280, %v281
        %376 = vadd.xlane.f32.xlu0 %v375
        %v377 = vpop.xlane.xlu0 %376
        %v378 = vmul.f32 %v284, 0.00390625
        %v379 = vmul.f32 %v287, 0.00390625
        %v380 = vmul.f32 %v290, 0.00390625
        %v381 = vmul.f32 %v293, 0.00390625
        %v382 = vmul.f32 %v296, 0.00390625
        %v383 = vmul.f32 %v299, 0.00390625
        %v384 = vmul.f32 %v302, 0.00390625
        %v385 = vmul.f32 %v305, 0.00390625
        %v386 = vmul.f32 %v308, 0.00390625
        %v387 = vmul.f32 %v311, 0.00390625
        %v388 = vmul.f32 %v314, 0.00390625
        %v389 = vmul.f32 %v317, 0.00390625
        %v390 = vmul.f32 %v320, 0.00390625
        %v391 = vmul.f32 %v323, 0.00390625
        %v392 = vmul.f32 %v326, 0.00390625
        %v393 = vmul.f32 %v329, 0.00390625
        %v394 = vmul.f32 %v332, 0.00390625
        %v395 = vmul.f32 %v335, 0.00390625
        %v396 = vmul.f32 %v338, 0.00390625
        %v397 = vmul.f32 %v341, 0.00390625
        %v398 = vmul.f32 %v344, 0.00390625
        %v399 = vmul.f32 %v347, 0.00390625
        %v400 = vmul.f32 %v350, 0.00390625
        %v401 = vmul.f32 %v353, 0.00390625
        %v402 = vmul.f32 %v356, 0.00390625
        %v403 = vmul.f32 %v359, 0.00390625
        %v404 = vmul.f32 %v362, 0.00390625
        %v405 = vmul.f32 %v365, 0.00390625
        %v406 = vmul.f32 %v368, 0.00390625
        %v407 = vmul.f32 %v371, 0.00390625
        %v408 = vmul.f32 %v374, 0.00390625
        %v409 = vmul.f32 %v377, 0.00390625
        %v410 = vmax.f32 %v218, %v219
        %411 = vmax.xlane.f32.xlu0 %v410
        %v412 = vpop.xlane.xlu0 %411
        %v413 = vmax.f32 %v220, %v221
        %414 = vmax.xlane.f32.xlu0 %v413
        %v415 = vpop.xlane.xlu0 %414
        %v416 = vmax.f32 %v222, %v223
        %417 = vmax.xlane.f32.xlu0 %v416
        %v418 = vpop.xlane.xlu0 %417
        %v419 = vmax.f32 %v224, %v225
        %420 = vmax.xlane.f32.xlu0 %v419
        %v421 = vpop.xlane.xlu0 %420
        %v422 = vmax.f32 %v226, %v227
        %423 = vmax.xlane.f32.xlu0 %v422
        %v424 = vpop.xlane.xlu0 %423
        %v425 = vmax.f32 %v228, %v229
        %426 = vmax.xlane.f32.xlu0 %v425
        %v427 = vpop.xlane.xlu0 %426
        %v428 = vmax.f32 %v230, %v231
        %429 = vmax.xlane.f32.xlu0 %v428
        %v430 = vpop.xlane.xlu0 %429
        %v431 = vmax.f32 %v232, %v233
        %432 = vmax.xlane.f32.xlu0 %v431
        %v433 = vpop.xlane.xlu0 %432
        %v434 = vmax.f32 %v234, %v235
        %435 = vmax.xlane.f32.xlu0 %v434
        %v436 = vpop.xlane.xlu0 %435
        %v437 = vmax.f32 %v236, %v237
        %438 = vmax.xlane.f32.xlu0 %v437
        %v439 = vpop.xlane.xlu0 %438
        %v440 = vmax.f32 %v238, %v239
        %441 = vmax.xlane.f32.xlu0 %v440
        %v442 = vpop.xlane.xlu0 %441
        %v443 = vmax.f32 %v240, %v241
        %444 = vmax.xlane.f32.xlu0 %v443
        %v445 = vpop.xlane.xlu0 %444
        %v446 = vmax.f32 %v242, %v243
        %447 = vmax.xlane.f32.xlu0 %v446
        %v448 = vpop.xlane.xlu0 %447
        %v449 = vmax.f32 %v244, %v245
        %450 = vmax.xlane.f32.xlu0 %v449
        %v451 = vpop.xlane.xlu0 %450
        %v452 = vmax.f32 %v246, %v247
        %453 = vmax.xlane.f32.xlu0 %v452
        %v454 = vpop.xlane.xlu0 %453
        %v455 = vmax.f32 %v248, %v249
        %456 = vmax.xlane.f32.xlu0 %v455
        %v457 = vpop.xlane.xlu0 %456
        %v458 = vmax.f32 %v250, %v251
        %459 = vmax.xlane.f32.xlu0 %v458
        %v460 = vpop.xlane.xlu0 %459
        %v461 = vmax.f32 %v252, %v253
        %462 = vmax.xlane.f32.xlu0 %v461
        %v463 = vpop.xlane.xlu0 %462
        %v464 = vmax.f32 %v254, %v255
        %465 = vmax.xlane.f32.xlu0 %v464
        %v466 = vpop.xlane.xlu0 %465
        %v467 = vmax.f32 %v256, %v257
        %468 = vmax.xlane.f32.xlu0 %v467
        %v469 = vpop.xlane.xlu0 %468
        %v470 = vmax.f32 %v258, %v259
        %471 = vmax.xlane.f32.xlu0 %v470
        %v472 = vpop.xlane.xlu0 %471
        %v473 = vmax.f32 %v260, %v261
        %474 = vmax.xlane.f32.xlu0 %v473
        %v475 = vpop.xlane.xlu0 %474
        %v476 = vmax.f32 %v262, %v263
        %477 = vmax.xlane.f32.xlu0 %v476
        %v478 = vpop.xlane.xlu0 %477
        %v479 = vmax.f32 %v264, %v265
        %480 = vmax.xlane.f32.xlu0 %v479
        %v481 = vpop.xlane.xlu0 %480
        %v482 = vmax.f32 %v266, %v267
        %483 = vmax.xlane.f32.xlu0 %v482
        %v484 = vpop.xlane.xlu0 %483
        %v485 = vmax.f32 %v268, %v269
        %486 = vmax.xlane.f32.xlu0 %v485
        %v487 = vpop.xlane.xlu0 %486
        %v488 = vmax.f32 %v270, %v271
        %489 = vmax.xlane.f32.xlu0 %v488
        %v490 = vpop.xlane.xlu0 %489
        %v491 = vmax.f32 %v272, %v273
        %492 = vmax.xlane.f32.xlu0 %v491
        %v493 = vpop.xlane.xlu0 %492
        %v494 = vmax.f32 %v274, %v275
        %495 = vmax.xlane.f32.xlu0 %v494
        %v496 = vpop.xlane.xlu0 %495
        %v497 = vmax.f32 %v276, %v277
        %498 = vmax.xlane.f32.xlu0 %v497
        %v499 = vpop.xlane.xlu0 %498
        %v500 = vmax.f32 %v278, %v279
        %501 = vmax.xlane.f32.xlu0 %v500
        %v502 = vpop.xlane.xlu0 %501
        %v503 = vmax.f32 %v280, %v281
        %504 = vmax.xlane.f32.xlu0 %v503
        %v505 = vpop.xlane.xlu0 %504
        %v506 = vld [vmem:[#allocation5] sm:$0xff]
        %v507 = vld [vmem:[#allocation5 + $0x8] sm:$0xff]
        %v508 = vld [vmem:[#allocation5 + $0x10] sm:$0xff]
        %v509 = vld [vmem:[#allocation5 + $0x18] sm:$0xff]
        %510 = vmatprep.subr.mxu0 0.0
        %511 = vmatpush1.msra.mxu0 %v378
        %512 = vmatprep.subr.mxu0 0.0
        %513 = vmatpush1.msra.mxu0 %v379
        %514 = vmatprep.subr.mxu0 0.0
        %515 = vmatpush1.msra.mxu0 %v380
        %516 = vmatprep.subr.mxu0 0.0
        %517 = vmatpush1.msra.mxu0 %v381
        %518 = vmatprep.subr.mxu0 0.0
        %519 = vmatpush1.msra.mxu0 %v382
        %520 = vmatprep.subr.mxu0 0.0
        %521 = vmatpush1.msra.mxu0 %v383
        %522 = vmatprep.subr.mxu0 0.0
        %523 = vmatpush1.msra.mxu0 %v384
        %524 = vmatprep.subr.mxu0 0.0
        %525 = vmatpush1.msra.mxu0 %v385
        %526 = vmatprep.subr.mxu0 0.0
        %527 = vmatpush1.msra.mxu0 %v386
        %528 = vmatprep.subr.mxu0 0.0
        %529 = vmatpush1.msra.mxu0 %v387
        %530 = vmatprep.subr.mxu0 0.0
        %531 = vmatpush1.msra.mxu0 %v388
        %532 = vmatprep.subr.mxu0 0.0
        %533 = vmatpush1.msra.mxu0 %v389
        %534 = vmatprep.subr.mxu0 0.0
        %535 = vmatpush1.msra.mxu0 %v390
        %536 = vmatprep.subr.mxu0 0.0
        %537 = vmatpush1.msra.mxu0 %v391
        %538 = vmatprep.subr.mxu0 0.0
        %539 = vmatpush1.msra.mxu0 %v392
        %540 = vmatprep.subr.mxu0 0.0
        %541 = vmatpush1.msra.mxu0 %v393
        %542 = vmatprep.subr.mxu0 0.0
        %543 = vmatpush1.msra.mxu0 %v394
        %544 = vmatprep.subr.mxu0 0.0
        %545 = vmatpush1.msra.mxu0 %v395
        %546 = vmatprep.subr.mxu0 0.0
        %547 = vmatpush1.msra.mxu0 %v396
        %548 = vmatprep.subr.mxu0 0.0
        %549 = vmatpush1.msra.mxu0 %v397
        %550 = vmatprep.subr.mxu0 0.0
        %551 = vmatpush1.msra.mxu0 %v398
        %552 = vmatprep.subr.mxu0 0.0
        %553 = vmatpush1.msra.mxu0 %v399
        %554 = vmatprep.subr.mxu0 0.0
        %555 = vmatpush1.msra.mxu0 %v400
        %556 = vmatprep.subr.mxu0 0.0
        %557 = vmatpush1.msra.mxu0 %v401
        %558 = vmatprep.subr.mxu0 0.0
        %559 = vmatpush1.msra.mxu0 %v402
        %560 = vmatprep.subr.mxu0 0.0
        %561 = vmatpush1.msra.mxu0 %v403
        %562 = vmatprep.subr.mxu0 0.0
        %563 = vmatpush1.msra.mxu0 %v404
        %564 = vmatprep.subr.mxu0 0.0
        %565 = vmatpush1.msra.mxu0 %v405
        %566 = vmatprep.subr.mxu0 0.0
        %567 = vmatpush1.msra.mxu0 %v406
        %568 = vmatprep.subr.mxu0 0.0
        %569 = vmatpush1.msra.mxu0 %v407
        %570 = vmatprep.subr.mxu0 0.0
        %571 = vmatpush1.msra.mxu0 %v408
        %572 = vmatprep.subr.mxu0 0.0
        %573 = vmatpush1.msra.mxu0 %v409
        %574 = vmatprep.mubr.f32.mxu0 %v507
        %575 = vmatmul.mubr.f32.gmra.mrb[0].mxu0 %v506
        %v576 = vpop.f32.mrb[0].mxu0
        %v577 = vadd.f32 0.0, %v576
        %v578 = vpop.f32.mrb[0].mxu0
        %579 = vmatprep.mubr.f32.mxu0 %v509
        %580 = vmatmul.mubr.f32.gmra.mrb[0].mxu0 %v508
        %v581 = vpop.f32.mrb[0].mxu0
        %v582 = vadd.f32 0.0, %v581
        %v583 = vpop.f32.mrb[0].mxu0
        %584 = vdwg.mxu0
        %v585 = vmax.f32 %v577, 0.0
        %v586 = vmax.f32 %v582, 0.0
        %587 = vmatprep.subr.mxu0 0.0
        %588 = vmatpush1.msra.mxu0 %v412
        %589 = vmatprep.subr.mxu0 0.0
        %590 = vmatpush1.msra.mxu0 %v415
        %591 = vmatprep.subr.mxu0 0.0
        %592 = vmatpush1.msra.mxu0 %v418
        %593 = vmatprep.subr.mxu0 0.0
        %594 = vmatpush1.msra.mxu0 %v421
        %595 = vmatprep.subr.mxu0 0.0
        %596 = vmatpush1.msra.mxu0 %v424
        %597 = vmatprep.subr.mxu0 0.0
        %598 = vmatpush1.msra.mxu0 %v427
        %599 = vmatprep.subr.mxu0 0.0
        %600 = vmatpush1.msra.mxu0 %v430
        %601 = vmatprep.subr.mxu0 0.0
        %602 = vmatpush1.msra.mxu0 %v433
        %603 = vmatprep.subr.mxu0 0.0
        %604 = vmatpush1.msra.mxu0 %v436
        %605 = vmatprep.subr.mxu0 0.0
        %606 = vmatpush1.msra.mxu0 %v439
        %607 = vmatprep.subr.mxu0 0.0
        %608 = vmatpush1.msra.mxu0 %v442
        %609 = vmatprep.subr.mxu0 0.0
        %610 = vmatpush1.msra.mxu0 %v445
        %611 = vmatprep.subr.mxu0 0.0
        %612 = vmatpush1.msra.mxu0 %v448
        %613 = vmatprep.subr.mxu0 0.0
        %614 = vmatpush1.msra.mxu0 %v451
        %615 = vmatprep.subr.mxu0 0.0
        %616 = vmatpush1.msra.mxu0 %v454
        %617 = vmatprep.subr.mxu0 0.0
        %618 = vmatpush1.msra.mxu0 %v457
        %619 = vmatprep.subr.mxu0 0.0
        %620 = vmatpush1.msra.mxu0 %v460
        %621 = vmatprep.subr.mxu0 0.0
        %622 = vmatpush1.msra.mxu0 %v463
        %623 = vmatprep.subr.mxu0 0.0
        %624 = vmatpush1.msra.mxu0 %v466
        %625 = vmatprep.subr.mxu0 0.0
        %626 = vmatpush1.msra.mxu0 %v469
        %627 = vmatprep.subr.mxu0 0.0
        %628 = vmatpush1.msra.mxu0 %v472
        %629 = vmatprep.subr.mxu0 0.0
        %630 = vmatpush1.msra.mxu0 %v475
        %631 = vmatprep.subr.mxu0 0.0
        %632 = vmatpush1.msra.mxu0 %v478
        %633 = vmatprep.subr.mxu0 0.0
        %634 = vmatpush1.msra.mxu0 %v481
        %635 = vmatprep.subr.mxu0 0.0
        %636 = vmatpush1.msra.mxu0 %v484
        %637 = vmatprep.subr.mxu0 0.0
        %638 = vmatpush1.msra.mxu0 %v487
        %639 = vmatprep.subr.mxu0 0.0
        %640 = vmatpush1.msra.mxu0 %v490
        %641 = vmatprep.subr.mxu0 0.0
        %642 = vmatpush1.msra.mxu0 %v493
        %643 = vmatprep.subr.mxu0 0.0
        %644 = vmatpush1.msra.mxu0 %v496
        %645 = vmatprep.subr.mxu0 0.0
        %646 = vmatpush1.msra.mxu0 %v499
        %647 = vmatprep.subr.mxu0 0.0
        %648 = vmatpush1.msra.mxu0 %v502
        %649 = vmatprep.subr.mxu0 0.0
        %650 = vmatpush1.msra.mxu0 %v505
        %651 = vmatprep.mubr.f32.mxu0 %v507
        %652 = vmatmul.mubr.f32.gmra.mrb[0].mxu0 %v506
        %v653 = vpop.f32.mrb[0].mxu0
        %v654 = vadd.f32 0.0, %v653
        %v655 = vpop.f32.mrb[0].mxu0
        %656 = vmatprep.mubr.f32.mxu0 %v509
        %657 = vmatmul.mubr.f32.gmra.mrb[0].mxu0 %v508
        %v658 = vpop.f32.mrb[0].mxu0
        %v659 = vadd.f32 0.0, %v658
        %v660 = vpop.f32.mrb[0].mxu0
        %661 = vdwg.mxu0
        %v662 = vmax.f32 %v654, 0.0
        %v663 = vmax.f32 %v659, 0.0
        %v664 = vadd.f32 %v585, %v662
        %v665 = vadd.f32 %v586, %v663
        %v666 = vld [vmem:[#allocation7] sm:$0xff]
        %v667 = vld [vmem:[#allocation7 + $0x8] sm:$0xff]
        %v668 = vld [vmem:[#allocation7 + $0x10] sm:$0xff]
        %v669 = vld [vmem:[#allocation7 + $0x18] sm:$0xff]
        %v670 = vld [vmem:[#allocation7 + $0x20] sm:$0xff]
        %v671 = vld [vmem:[#allocation7 + $0x28] sm:$0xff]
        %v672 = vld [vmem:[#allocation7 + $0x30] sm:$0xff]
        %v673 = vld [vmem:[#allocation7 + $0x38] sm:$0xff]
        %v674 = vld [vmem:[#allocation7 + $0x40] sm:$0xff]
        %v675 = vld [vmem:[#allocation7 + $0x48] sm:$0xff]
        %v676 = vld [vmem:[#allocation7 + $0x50] sm:$0xff]
        %v677 = vld [vmem:[#allocation7 + $0x58] sm:$0xff]
        %v678 = vld [vmem:[#allocation7 + $0x60] sm:$0xff]
        %v679 = vld [vmem:[#allocation7 + $0x68] sm:$0xff]
        %v680 = vld [vmem:[#allocation7 + $0x70] sm:$0xff]
        %v681 = vld [vmem:[#allocation7 + $0x78] sm:$0xff]
        %v682 = vld [vmem:[#allocation7 + $0x80] sm:$0xff]
        %v683 = vld [vmem:[#allocation7 + $0x88] sm:$0xff]
        %v684 = vld [vmem:[#allocation7 + $0x90] sm:$0xff]
        %v685 = vld [vmem:[#allocation7 + $0x98] sm:$0xff]
        %v686 = vld [vmem:[#allocation7 + $0xa0] sm:$0xff]
        %v687 = vld [vmem:[#allocation7 + $0xa8] sm:$0xff]
        %v688 = vld [vmem:[#allocation7 + $0xb0] sm:$0xff]
        %v689 = vld [vmem:[#allocation7 + $0xb8] sm:$0xff]
        %v690 = vld [vmem:[#allocation7 + $0xc0] sm:$0xff]
        %v691 = vld [vmem:[#allocation7 + $0xc8] sm:$0xff]
        %v692 = vld [vmem:[#allocation7 + $0xd0] sm:$0xff]
        %v693 = vld [vmem:[#allocation7 + $0xd8] sm:$0xff]
        %v694 = vld [vmem:[#allocation7 + $0xe0] sm:$0xff]
        %v695 = vld [vmem:[#allocation7 + $0xe8] sm:$0xff]
        %v696 = vld [vmem:[#allocation7 + $0xf0] sm:$0xff]
        %v697 = vld [vmem:[#allocation7 + $0xf8] sm:$0xff]
        %vm698 = vcmask 130048
        %v700 = vsel %vm698, %v666, 0
        %v703 = vsel %vm698, %v667, 0
        %v706 = vsel %vm698, %v668, 0
        %v709 = vsel %vm698, %v669, 0
        %v712 = vsel %vm698, %v670, 0
        %v715 = vsel %vm698, %v671, 0
        %v718 = vsel %vm698, %v672, 0
        %v721 = vsel %vm698, %v673, 0
        %v724 = vsel %vm698, %v674, 0
        %v727 = vsel %vm698, %v675, 0
        %v730 = vsel %vm698, %v676, 0
        %v733 = vsel %vm698, %v677, 0
        %v736 = vsel %vm698, %v678, 0
        %v739 = vsel %vm698, %v679, 0
        %v742 = vsel %vm698, %v680, 0
        %v745 = vsel %vm698, %v681, 0
        %v748 = vsel %vm698, %v682, 0
        %v751 = vsel %vm698, %v683, 0
        %v754 = vsel %vm698, %v684, 0
        %v757 = vsel %vm698, %v685, 0
        %v760 = vsel %vm698, %v686, 0
        %v763 = vsel %vm698, %v687, 0
        %v766 = vsel %vm698, %v688, 0
        %v769 = vsel %vm698, %v689, 0
        %v772 = vsel %vm698, %v690, 0
        %v775 = vsel %vm698, %v691, 0
        %v778 = vsel %vm698, %v692, 0
        %v781 = vsel %vm698, %v693, 0
        %v784 = vsel %vm698, %v694, 0
        %v787 = vsel %vm698, %v695, 0
        %v790 = vsel %vm698, %v696, 0
        %v793 = vsel %vm698, %v697, 0
        %795 = vmatprep.subr.mxu0 0.0
        %796 = vmatpush1.msra.mxu0 %v664
        %797 = vmatprep.subr.mxu0 0.0
        %798 = vmatpush1.msra.mxu0 %v665
        %799 = vmatprep.subr.mxu0 0.0
        %800 = vmatpush1.msra.mxu0 0.0
        %801 = vmatprep.subr.mxu0 0.0
        %802 = vmatpush1.msra.mxu0 0.0
        %803 = vmatprep.subr.mxu0 0.0
        %804 = vmatpush1.msra.mxu0 0.0
        %805 = vmatprep.subr.mxu0 0.0
        %806 = vmatpush1.msra.mxu0 0.0
        %807 = vmatprep.subr.mxu0 0.0
        %808 = vmatpush1.msra.mxu0 0.0
        %809 = vmatprep.subr.mxu0 0.0
        %810 = vmatpush1.msra.mxu0 0.0
        %811 = vmatprep.subr.mxu0 0.0
        %812 = vmatpush1.msra.mxu0 0.0
        %813 = vmatprep.subr.mxu0 0.0
        %814 = vmatpush1.msra.mxu0 0.0
        %815 = vmatprep.subr.mxu0 0.0
        %816 = vmatpush1.msra.mxu0 0.0
        %817 = vmatprep.subr.mxu0 0.0
        %818 = vmatpush1.msra.mxu0 0.0
        %819 = vmatprep.subr.mxu0 0.0
        %820 = vmatpush1.msra.mxu0 0.0
        %821 = vmatprep.subr.mxu0 0.0
        %822 = vmatpush1.msra.mxu0 0.0
        %823 = vmatprep.subr.mxu0 0.0
        %824 = vmatpush1.msra.mxu0 0.0
        %825 = vmatprep.subr.mxu0 0.0
        %826 = vmatpush1.msra.mxu0 0.0
        %827 = vmatprep.subr.mxu0 0.0
        %828 = vmatpush1.msra.mxu0 0.0
        %829 = vmatprep.subr.mxu0 0.0
        %830 = vmatpush1.msra.mxu0 0.0
        %831 = vmatprep.subr.mxu0 0.0
        %832 = vmatpush1.msra.mxu0 0.0
        %833 = vmatprep.subr.mxu0 0.0
        %834 = vmatpush1.msra.mxu0 0.0
        %835 = vmatprep.subr.mxu0 0.0
        %836 = vmatpush1.msra.mxu0 0.0
        %837 = vmatprep.subr.mxu0 0.0
        %838 = vmatpush1.msra.mxu0 0.0
        %839 = vmatprep.subr.mxu0 0.0
        %840 = vmatpush1.msra.mxu0 0.0
        %841 = vmatprep.subr.mxu0 0.0
        %842 = vmatpush1.msra.mxu0 0.0
        %843 = vmatprep.subr.mxu0 0.0
        %844 = vmatpush1.msra.mxu0 0.0
        %845 = vmatprep.subr.mxu0 0.0
        %846 = vmatpush1.msra.mxu0 0.0
        %847 = vmatprep.subr.mxu0 0.0
        %848 = vmatpush1.msra.mxu0 0.0
        %849 = vmatprep.subr.mxu0 0.0
        %850 = vmatpush1.msra.mxu0 0.0
        %851 = vmatprep.subr.mxu0 0.0
        %852 = vmatpush1.msra.mxu0 0.0
        %853 = vmatprep.subr.mxu0 0.0
        %854 = vmatpush1.msra.mxu0 0.0
        %855 = vmatprep.subr.mxu0 0.0
        %856 = vmatpush1.msra.mxu0 0.0
        %857 = vmatprep.subr.mxu0 0.0
        %858 = vmatpush1.msra.mxu0 0.0
        %859 = vmatprep.mubr.f32.mxu0 0.0
        %860 = vmatmul.mubr.f32.gmra.mrb[0].mxu0 %v700
        %v861 = vpop.f32.mrb[0].mxu0
        %v862 = vadd.f32 0.0, %v861
        %v863 = vpop.f32.mrb[0].mxu0
        %864 = vmatprep.mubr.f32.mxu0 0.0
        %865 = vmatmul.mubr.f32.gmra.mrb[0].mxu0 %v703
        %v866 = vpop.f32.mrb[0].mxu0
        %v867 = vadd.f32 0.0, %v866
        %v868 = vpop.f32.mrb[0].mxu0
        %869 = vmatprep.mubr.f32.mxu0 0.0
        %870 = vmatmul.mubr.f32.gmra.mrb[0].mxu0 %v706
        %v871 = vpop.f32.mrb[0].mxu0
        %v872 = vadd.f32 0.0, %v871
        %v873 = vpop.f32.mrb[0].mxu0
        %874 = vmatprep.mubr.f32.mxu0 0.0
        %875 = vmatmul.mubr.f32.gmra.mrb[0].mxu0 %v709
        %v876 = vpop.f32.mrb[0].mxu0
        %v877 = vadd.f32 0.0, %v876
        %v878 = vpop.f32.mrb[0].mxu0
        %879 = vmatprep.mubr.f32.mxu0 0.0
        %880 = vmatmul.mubr.f32.gmra.mrb[0].mxu0 %v712
        %v881 = vpop.f32.mrb[0].mxu0
        %v882 = vadd.f32 0.0, %v881
        %v883 = vpop.f32.mrb[0].mxu0
        %884 = vmatprep.mubr.f32.mxu0 0.0
        %885 = vmatmul.mubr.f32.gmra.mrb[0].mxu0 %v715
        %v886 = vpop.f32.mrb[0].mxu0
        %v887 = vadd.f32 0.0, %v886
        %v888 = vpop.f32.mrb[0].mxu0
        %889 = vmatprep.mubr.f32.mxu0 0.0
        %890 = vmatmul.mubr.f32.gmra.mrb[0].mxu0 %v718
        %v891 = vpop.f32.mrb[0].mxu0
        %v892 = vadd.f32 0.0, %v891
        %v893 = vpop.f32.mrb[0].mxu0
        %894 = vmatprep.mubr.f32.mxu0 0.0
        %895 = vmatmul.mubr.f32.gmra.mrb[0].mxu0 %v721
        %v896 = vpop.f32.mrb[0].mxu0
        %v897 = vadd.f32 0.0, %v896
        %v898 = vpop.f32.mrb[0].mxu0
        %899 = vmatprep.mubr.f32.mxu0 0.0
        %900 = vmatmul.mubr.f32.gmra.mrb[0].mxu0 %v724
        %v901 = vpop.f32.mrb[0].mxu0
        %v902 = vadd.f32 0.0, %v901
        %v903 = vpop.f32.mrb[0].mxu0
        %904 = vmatprep.mubr.f32.mxu0 0.0
        %905 = vmatmul.mubr.f32.gmra.mrb[0].mxu0 %v727
        %v906 = vpop.f32.mrb[0].mxu0
        %v907 = vadd.f32 0.0, %v906
        %v908 = vpop.f32.mrb[0].mxu0
        %909 = vmatprep.mubr.f32.mxu0 0.0
        %910 = vmatmul.mubr.f32.gmra.mrb[0].mxu0 %v730
        %v911 = vpop.f32.mrb[0].mxu0
        %v912 = vadd.f32 0.0, %v911
        %v913 = vpop.f32.mrb[0].mxu0
        %914 = vmatprep.mubr.f32.mxu0 0.0
        %915 = vmatmul.mubr.f32.gmra.mrb[0].mxu0 %v733
        %v916 = vpop.f32.mrb[0].mxu0
        %v917 = vadd.f32 0.0, %v916
        %v918 = vpop.f32.mrb[0].mxu0
        %919 = vmatprep.mubr.f32.mxu0 0.0
        %920 = vmatmul.mubr.f32.gmra.mrb[0].mxu0 %v736
        %v921 = vpop.f32.mrb[0].mxu0
        %v922 = vadd.f32 0.0, %v921
        %v923 = vpop.f32.mrb[0].mxu0
        %924 = vmatprep.mubr.f32.mxu0 0.0
        %925 = vmatmul.mubr.f32.gmra.mrb[0].mxu0 %v739
        %v926 = vpop.f32.mrb[0].mxu0
        %v927 = vadd.f32 0.0, %v926
        %v928 = vpop.f32.mrb[0].mxu0
        %929 = vmatprep.mubr.f32.mxu0 0.0
        %930 = vmatmul.mubr.f32.gmra.mrb[0].mxu0 %v742
        %v931 = vpop.f32.mrb[0].mxu0
        %v932 = vadd.f32 0.0, %v931
        %v933 = vpop.f32.mrb[0].mxu0
        %934 = vmatprep.mubr.f32.mxu0 0.0
        %935 = vmatmul.mubr.f32.gmra.mrb[0].mxu0 %v745
        %v936 = vpop.f32.mrb[0].mxu0
        %v937 = vadd.f32 0.0, %v936
        %v938 = vpop.f32.mrb[0].mxu0
        %939 = vmatprep.mubr.f32.mxu0 0.0
        %940 = vmatmul.mubr.f32.gmra.mrb[0].mxu0 %v748
        %v941 = vpop.f32.mrb[0].mxu0
        %v942 = vadd.f32 0.0, %v941
        %v943 = vpop.f32.mrb[0].mxu0
        %944 = vmatprep.mubr.f32.mxu0 0.0
        %945 = vmatmul.mubr.f32.gmra.mrb[0].mxu0 %v751
        %v946 = vpop.f32.mrb[0].mxu0
        %v947 = vadd.f32 0.0, %v946
        %v948 = vpop.f32.mrb[0].mxu0
        %949 = vmatprep.mubr.f32.mxu0 0.0
        %950 = vmatmul.mubr.f32.gmra.mrb[0].mxu0 %v754
        %v951 = vpop.f32.mrb[0].mxu0
        %v952 = vadd.f32 0.0, %v951
        %v953 = vpop.f32.mrb[0].mxu0
        %954 = vmatprep.mubr.f32.mxu0 0.0
        %955 = vmatmul.mubr.f32.gmra.mrb[0].mxu0 %v757
        %v956 = vpop.f32.mrb[0].mxu0
        %v957 = vadd.f32 0.0, %v956
        %v958 = vpop.f32.mrb[0].mxu0
        %959 = vmatprep.mubr.f32.mxu0 0.0
        %960 = vmatmul.mubr.f32.gmra.mrb[0].mxu0 %v760
        %v961 = vpop.f32.mrb[0].mxu0
        %v962 = vadd.f32 0.0, %v961
        %v963 = vpop.f32.mrb[0].mxu0
        %964 = vmatprep.mubr.f32.mxu0 0.0
        %965 = vmatmul.mubr.f32.gmra.mrb[0].mxu0 %v763
        %v966 = vpop.f32.mrb[0].mxu0
        %v967 = vadd.f32 0.0, %v966
        %v968 = vpop.f32.mrb[0].mxu0
        %969 = vmatprep.mubr.f32.mxu0 0.0
        %970 = vmatmul.mubr.f32.gmra.mrb[0].mxu0 %v766
        %v971 = vpop.f32.mrb[0].mxu0
        %v972 = vadd.f32 0.0, %v971
        %v973 = vpop.f32.mrb[0].mxu0
        %974 = vmatprep.mubr.f32.mxu0 0.0
        %975 = vmatmul.mubr.f32.gmra.mrb[0].mxu0 %v769
        %v976 = vpop.f32.mrb[0].mxu0
        %v977 = vadd.f32 0.0, %v976
        %v978 = vpop.f32.mrb[0].mxu0
        %979 = vmatprep.mubr.f32.mxu0 0.0
        %980 = vmatmul.mubr.f32.gmra.mrb[0].mxu0 %v772
        %v981 = vpop.f32.mrb[0].mxu0
        %v982 = vadd.f32 0.0, %v981
        %v983 = vpop.f32.mrb[0].mxu0
        %984 = vmatprep.mubr.f32.mxu0 0.0
        %985 = vmatmul.mubr.f32.gmra.mrb[0].mxu0 %v775
        %v986 = vpop.f32.mrb[0].mxu0
        %v987 = vadd.f32 0.0, %v986
        %v988 = vpop.f32.mrb[0].mxu0
        %989 = vmatprep.mubr.f32.mxu0 0.0
        %990 = vmatmul.mubr.f32.gmra.mrb[0].mxu0 %v778
        %v991 = vpop.f32.mrb[0].mxu0
        %v992 = vadd.f32 0.0, %v991
        %v993 = vpop.f32.mrb[0].mxu0
        %994 = vmatprep.mubr.f32.mxu0 0.0
        %995 = vmatmul.mubr.f32.gmra.mrb[0].mxu0 %v781
        %v996 = vpop.f32.mrb[0].mxu0
        %v997 = vadd.f32 0.0, %v996
        %v998 = vpop.f32.mrb[0].mxu0
        %999 = vmatprep.mubr.f32.mxu0 0.0
        %1000 = vmatmul.mubr.f32.gmra.mrb[0].mxu0 %v784
        %v1001 = vpop.f32.mrb[0].mxu0
        %v1002 = vadd.f32 0.0, %v1001
        %v1003 = vpop.f32.mrb[0].mxu0
        %1004 = vmatprep.mubr.f32.mxu0 0.0
        %1005 = vmatmul.mubr.f32.gmra.mrb[0].mxu0 %v787
        %v1006 = vpop.f32.mrb[0].mxu0
        %v1007 = vadd.f32 0.0, %v1006
        %v1008 = vpop.f32.mrb[0].mxu0
        %1009 = vmatprep.mubr.f32.mxu0 0.0
        %1010 = vmatmul.mubr.f32.gmra.mrb[0].mxu0 %v790
        %v1011 = vpop.f32.mrb[0].mxu0
        %v1012 = vadd.f32 0.0, %v1011
        %v1013 = vpop.f32.mrb[0].mxu0
        %1014 = vmatprep.mubr.f32.mxu0 0.0
        %1015 = vmatmul.mubr.f32.gmra.mrb[0].mxu0 %v793
        %v1016 = vpop.f32.mrb[0].mxu0
        %v1017 = vadd.f32 0.0, %v1016
        %v1018 = vpop.f32.mrb[0].mxu0
        %1019 = vdwg.mxu0
        %v1020 = vxor.u32 %v862, 2147483648
        %v1021 = vxor.u32 %v867, 2147483648
        %v1022 = vxor.u32 %v872, 2147483648
        %v1023 = vxor.u32 %v877, 2147483648
        %v1024 = vxor.u32 %v882, 2147483648
        %v1025 = vxor.u32 %v887, 2147483648
        %v1026 = vxor.u32 %v892, 2147483648
        %v1027 = vxor.u32 %v897, 2147483648
        %v1028 = vxor.u32 %v902, 2147483648
        %v1029 = vxor.u32 %v907, 2147483648
        %v1030 = vxor.u32 %v912, 2147483648
        %v1031 = vxor.u32 %v917, 2147483648
        %v1032 = vxor.u32 %v922, 2147483648
        %v1033 = vxor.u32 %v927, 2147483648
        %v1034 = vxor.u32 %v932, 2147483648
        %v1035 = vxor.u32 %v937, 2147483648
        %v1036 = vxor.u32 %v942, 2147483648
        %v1037 = vxor.u32 %v947, 2147483648
        %v1038 = vxor.u32 %v952, 2147483648
        %v1039 = vxor.u32 %v957, 2147483648
        %v1040 = vxor.u32 %v962, 2147483648
        %v1041 = vxor.u32 %v967, 2147483648
        %v1042 = vxor.u32 %v972, 2147483648
        %v1043 = vxor.u32 %v977, 2147483648
        %v1044 = vxor.u32 %v982, 2147483648
        %v1045 = vxor.u32 %v987, 2147483648
        %v1046 = vxor.u32 %v992, 2147483648
        %v1047 = vxor.u32 %v997, 2147483648
        %v1048 = vxor.u32 %v1002, 2147483648
        %v1049 = vxor.u32 %v1007, 2147483648
        %v1050 = vxor.u32 %v1012, 2147483648
        %v1051 = vxor.u32 %v1017, 2147483648
        %v1052 = vmul.f32 %v1020, 1.442695
        %v1053 = vpow.pop %v1052
        %v1054 = vmul.f32 %v1021, 1.442695
        %v1055 = vpow.pop %v1054
        %v1056 = vmul.f32 %v1022, 1.442695
        %v1057 = vpow.pop %v1056
        %v1058 = vmul.f32 %v1023, 1.442695
        %v1059 = vpow.pop %v1058
        %v1060 = vmul.f32 %v1024, 1.442695
        %v1061 = vpow.pop %v1060
        %v1062 = vmul.f32 %v1025, 1.442695
        %v1063 = vpow.pop %v1062
        %v1064 = vmul.f32 %v1026, 1.442695
        %v1065 = vpow.pop %v1064
        %v1066 = vmul.f32 %v1027, 1.442695
        %v1067 = vpow.pop %v1066
        %v1068 = vmul.f32 %v1028, 1.442695
        %v1069 = vpow.pop %v1068
        %v1070 = vmul.f32 %v1029, 1.442695
        %v1071 = vpow.pop %v1070
        %v1072 = vmul.f32 %v1030, 1.442695
        %v1073 = vpow.pop %v1072
        %v1074 = vmul.f32 %v1031, 1.442695
        %v1075 = vpow.pop %v1074
        %v1076 = vmul.f32 %v1032, 1.442695
        %v1077 = vpow.pop %v1076
        %v1078 = vmul.f32 %v1033, 1.442695
        %v1079 = vpow.pop %v1078
        %v1080 = vmul.f32 %v1034, 1.442695
        %v1081 = vpow.pop %v1080
        %v1082 = vmul.f32 %v1035, 1.442695
        %v1083 = vpow.pop %v1082
        %v1084 = vmul.f32 %v1036, 1.442695
        %v1085 = vpow.pop %v1084
        %v1086 = vmul.f32 %v1037, 1.442695
        %v1087 = vpow.pop %v1086
        %v1088 = vmul.f32 %v1038, 1.442695
        %v1089 = vpow.pop %v1088
        %v1090 = vmul.f32 %v1039, 1.442695
        %v1091 = vpow.pop %v1090
        %v1092 = vmul.f32 %v1040, 1.442695
        %v1093 = vpow.pop %v1092
        %v1094 = vmul.f32 %v1041, 1.442695
        %v1095 = vpow.pop %v1094
        %v1096 = vmul.f32 %v1042, 1.442695
        %v1097 = vpow.pop %v1096
        %v1098 = vmul.f32 %v1043, 1.442695
        %v1099 = vpow.pop %v1098
        %v1100 = vmul.f32 %v1044, 1.442695
        %v1101 = vpow.pop %v1100
        %v1102 = vmul.f32 %v1045, 1.442695
        %v1103 = vpow.pop %v1102
        %v1104 = vmul.f32 %v1046, 1.442695
        %v1105 = vpow.pop %v1104
        %v1106 = vmul.f32 %v1047, 1.442695
        %v1107 = vpow.pop %v1106
        %v1108 = vmul.f32 %v1048, 1.442695
        %v1109 = vpow.pop %v1108
        %v1110 = vmul.f32 %v1049, 1.442695
        %v1111 = vpow.pop %v1110
        %v1112 = vmul.f32 %v1050, 1.442695
        %v1113 = vpow.pop %v1112
        %v1114 = vmul.f32 %v1051, 1.442695
        %v1115 = vpow.pop %v1114
        %v1116 = vadd.f32 %v1053, 1.0
        %v1117 = vadd.f32 %v1055, 1.0
        %v1118 = vadd.f32 %v1057, 1.0
        %v1119 = vadd.f32 %v1059, 1.0
        %v1120 = vadd.f32 %v1061, 1.0
        %v1121 = vadd.f32 %v1063, 1.0
        %v1122 = vadd.f32 %v1065, 1.0
        %v1123 = vadd.f32 %v1067, 1.0
        %v1124 = vadd.f32 %v1069, 1.0
        %v1125 = vadd.f32 %v1071, 1.0
        %v1126 = vadd.f32 %v1073, 1.0
        %v1127 = vadd.f32 %v1075, 1.0
        %v1128 = vadd.f32 %v1077, 1.0
        %v1129 = vadd.f32 %v1079, 1.0
        %v1130 = vadd.f32 %v1081, 1.0
        %v1131 = vadd.f32 %v1083, 1.0
        %v1132 = vadd.f32 %v1085, 1.0
        %v1133 = vadd.f32 %v1087, 1.0
        %v1134 = vadd.f32 %v1089, 1.0
        %v1135 = vadd.f32 %v1091, 1.0
        %v1136 = vadd.f32 %v1093, 1.0
        %v1137 = vadd.f32 %v1095, 1.0
        %v1138 = vadd.f32 %v1097, 1.0
        %v1139 = vadd.f32 %v1099, 1.0
        %v1140 = vadd.f32 %v1101, 1.0
        %v1141 = vadd.f32 %v1103, 1.0
        %v1142 = vadd.f32 %v1105, 1.0
        %v1143 = vadd.f32 %v1107, 1.0
        %v1144 = vadd.f32 %v1109, 1.0
        %v1145 = vadd.f32 %v1111, 1.0
        %v1146 = vadd.f32 %v1113, 1.0
        %v1147 = vadd.f32 %v1115, 1.0
        %v1148 = vrcp.pop %v1116
        %v1149 = vmul.f32 1.0, %v1148
        %v1150 = vrcp.pop %v1117
        %v1151 = vmul.f32 1.0, %v1150
        %v1152 = vrcp.pop %v1118
        %v1153 = vmul.f32 1.0, %v1152
        %v1154 = vrcp.pop %v1119
        %v1155 = vmul.f32 1.0, %v1154
        %v1156 = vrcp.pop %v1120
        %v1157 = vmul.f32 1.0, %v1156
        %v1158 = vrcp.pop %v1121
        %v1159 = vmul.f32 1.0, %v1158
        %v1160 = vrcp.pop %v1122
        %v1161 = vmul.f32 1.0, %v1160
        %v1162 = vrcp.pop %v1123
        %v1163 = vmul.f32 1.0, %v1162
        %v1164 = vrcp.pop %v1124
        %v1165 = vmul.f32 1.0, %v1164
        %v1166 = vrcp.pop %v1125
        %v1167 = vmul.f32 1.0, %v1166
        %v1168 = vrcp.pop %v1126
        %v1169 = vmul.f32 1.0, %v1168
        %v1170 = vrcp.pop %v1127
        %v1171 = vmul.f32 1.0, %v1170
        %v1172 = vrcp.pop %v1128
        %v1173 = vmul.f32 1.0, %v1172
        %v1174 = vrcp.pop %v1129
        %v1175 = vmul.f32 1.0, %v1174
        %v1176 = vrcp.pop %v1130
        %v1177 = vmul.f32 1.0, %v1176
        %v1178 = vrcp.pop %v1131
        %v1179 = vmul.f32 1.0, %v1178
        %v1180 = vrcp.pop %v1132
        %v1181 = vmul.f32 1.0, %v1180
        %v1182 = vrcp.pop %v1133
        %v1183 = vmul.f32 1.0, %v1182
        %v1184 = vrcp.pop %v1134
        %v1185 = vmul.f32 1.0, %v1184
        %v1186 = vrcp.pop %v1135
        %v1187 = vmul.f32 1.0, %v1186
        %v1188 = vrcp.pop %v1136
        %v1189 = vmul.f32 1.0, %v1188
        %v1190 = vrcp.pop %v1137
        %v1191 = vmul.f32 1.0, %v1190
        %v1192 = vrcp.pop %v1138
        %v1193 = vmul.f32 1.0, %v1192
        %v1194 = vrcp.pop %v1139
        %v1195 = vmul.f32 1.0, %v1194
        %v1196 = vrcp.pop %v1140
        %v1197 = vmul.f32 1.0, %v1196
        %v1198 = vrcp.pop %v1141
        %v1199 = vmul.f32 1.0, %v1198
        %v1200 = vrcp.pop %v1142
        %v1201 = vmul.f32 1.0, %v1200
        %v1202 = vrcp.pop %v1143
        %v1203 = vmul.f32 1.0, %v1202
        %v1204 = vrcp.pop %v1144
        %v1205 = vmul.f32 1.0, %v1204
        %v1206 = vrcp.pop %v1145
        %v1207 = vmul.f32 1.0, %v1206
        %v1208 = vrcp.pop %v1146
        %v1209 = vmul.f32 1.0, %v1208
        %v1210 = vrcp.pop %v1147
        %v1211 = vmul.f32 1.0, %v1210
        %1213 = vset.pattern.permute.xlu0 0
        %1214 = vperm.xlu0 %1213, %v1149
        %v1215 = vpop.permute.xlu0 %1214
        %1218 = vset.pattern.permute.xlu0 0
        %1219 = vperm.xlu0 %1218, %v1151
        %v1220 = vpop.permute.xlu0 %1219
        %1223 = vset.pattern.permute.xlu0 0
        %1224 = vperm.xlu0 %1223, %v1153
        %v1225 = vpop.permute.xlu0 %1224
        %1228 = vset.pattern.permute.xlu0 0
        %1229 = vperm.xlu0 %1228, %v1155
        %v1230 = vpop.permute.xlu0 %1229
        %1233 = vset.pattern.permute.xlu0 0
        %1234 = vperm.xlu0 %1233, %v1157
        %v1235 = vpop.permute.xlu0 %1234
        %1238 = vset.pattern.permute.xlu0 0
        %1239 = vperm.xlu0 %1238, %v1159
        %v1240 = vpop.permute.xlu0 %1239
        %1243 = vset.pattern.permute.xlu0 0
        %1244 = vperm.xlu0 %1243, %v1161
        %v1245 = vpop.permute.xlu0 %1244
        %1248 = vset.pattern.permute.xlu0 0
        %1249 = vperm.xlu0 %1248, %v1163
        %v1250 = vpop.permute.xlu0 %1249
        %1253 = vset.pattern.permute.xlu0 0
        %1254 = vperm.xlu0 %1253, %v1165
        %v1255 = vpop.permute.xlu0 %1254
        %1258 = vset.pattern.permute.xlu0 0
        %1259 = vperm.xlu0 %1258, %v1167
        %v1260 = vpop.permute.xlu0 %1259
        %1263 = vset.pattern.permute.xlu0 0
        %1264 = vperm.xlu0 %1263, %v1169
        %v1265 = vpop.permute.xlu0 %1264
        %1268 = vset.pattern.permute.xlu0 0
        %1269 = vperm.xlu0 %1268, %v1171
        %v1270 = vpop.permute.xlu0 %1269
        %1273 = vset.pattern.permute.xlu0 0
        %1274 = vperm.xlu0 %1273, %v1173
        %v1275 = vpop.permute.xlu0 %1274
        %1278 = vset.pattern.permute.xlu0 0
        %1279 = vperm.xlu0 %1278, %v1175
        %v1280 = vpop.permute.xlu0 %1279
        %1283 = vset.pattern.permute.xlu0 0
        %1284 = vperm.xlu0 %1283, %v1177
        %v1285 = vpop.permute.xlu0 %1284
        %1288 = vset.pattern.permute.xlu0 0
        %1289 = vperm.xlu0 %1288, %v1179
        %v1290 = vpop.permute.xlu0 %1289
        %1293 = vset.pattern.permute.xlu0 0
        %1294 = vperm.xlu0 %1293, %v1181
        %v1295 = vpop.permute.xlu0 %1294
        %1298 = vset.pattern.permute.xlu0 0
        %1299 = vperm.xlu0 %1298, %v1183
        %v1300 = vpop.permute.xlu0 %1299
        %1303 = vset.pattern.permute.xlu0 0
        %1304 = vperm.xlu0 %1303, %v1185
        %v1305 = vpop.permute.xlu0 %1304
        %1308 = vset.pattern.permute.xlu0 0
        %1309 = vperm.xlu0 %1308, %v1187
        %v1310 = vpop.permute.xlu0 %1309
        %1313 = vset.pattern.permute.xlu0 0
        %1314 = vperm.xlu0 %1313, %v1189
        %v1315 = vpop.permute.xlu0 %1314
        %1318 = vset.pattern.permute.xlu0 0
        %1319 = vperm.xlu0 %1318, %v1191
        %v1320 = vpop.permute.xlu0 %1319
        %1323 = vset.pattern.permute.xlu0 0
        %1324 = vperm.xlu0 %1323, %v1193
        %v1325 = vpop.permute.xlu0 %1324
        %1328 = vset.pattern.permute.xlu0 0
        %1329 = vperm.xlu0 %1328, %v1195
        %v1330 = vpop.permute.xlu0 %1329
        %1333 = vset.pattern.permute.xlu0 0
        %1334 = vperm.xlu0 %1333, %v1197
        %v1335 = vpop.permute.xlu0 %1334
        %1338 = vset.pattern.permute.xlu0 0
        %1339 = vperm.xlu0 %1338, %v1199
        %v1340 = vpop.permute.xlu0 %1339
        %1343 = vset.pattern.permute.xlu0 0
        %1344 = vperm.xlu0 %1343, %v1201
        %v1345 = vpop.permute.xlu0 %1344
        %1348 = vset.pattern.permute.xlu0 0
        %1349 = vperm.xlu0 %1348, %v1203
        %v1350 = vpop.permute.xlu0 %1349
        %1353 = vset.pattern.permute.xlu0 0
        %1354 = vperm.xlu0 %1353, %v1205
        %v1355 = vpop.permute.xlu0 %1354
        %1358 = vset.pattern.permute.xlu0 0
        %1359 = vperm.xlu0 %1358, %v1207
        %v1360 = vpop.permute.xlu0 %1359
        %1363 = vset.pattern.permute.xlu0 0
        %1364 = vperm.xlu0 %1363, %v1209
        %v1365 = vpop.permute.xlu0 %1364
        %1368 = vset.pattern.permute.xlu0 0
        %1369 = vperm.xlu0 %1368, %v1211
        %v1370 = vpop.permute.xlu0 %1369
        %v1372 = vmul.f32 %v218, %v1215
        %v1373 = vmul.f32 %v219, %v1215
        %v1374 = vmul.f32 %v220, %v1220
        %v1375 = vmul.f32 %v221, %v1220
        %v1376 = vmul.f32 %v222, %v1225
        %v1377 = vmul.f32 %v223, %v1225
        %v1378 = vmul.f32 %v224, %v1230
        %v1379 = vmul.f32 %v225, %v1230
        %v1380 = vmul.f32 %v226, %v1235
        %v1381 = vmul.f32 %v227, %v1235
        %v1382 = vmul.f32 %v228, %v1240
        %v1383 = vmul.f32 %v229, %v1240
        %v1384 = vmul.f32 %v230, %v1245
        %v1385 = vmul.f32 %v231, %v1245
        %v1386 = vmul.f32 %v232, %v1250
        %v1387 = vmul.f32 %v233, %v1250
        %v1388 = vmul.f32 %v234, %v1255
        %v1389 = vmul.f32 %v235, %v1255
        %v1390 = vmul.f32 %v236, %v1260
        %v1391 = vmul.f32 %v237, %v1260
        %v1392 = vmul.f32 %v238, %v1265
        %v1393 = vmul.f32 %v239, %v1265
        %v1394 = vmul.f32 %v240, %v1270
        %v1395 = vmul.f32 %v241, %v1270
        %v1396 = vmul.f32 %v242, %v1275
        %v1397 = vmul.f32 %v243, %v1275
        %v1398 = vmul.f32 %v244, %v1280
        %v1399 = vmul.f32 %v245, %v1280
        %v1400 = vmul.f32 %v246, %v1285
        %v1401 = vmul.f32 %v247, %v1285
        %v1402 = vmul.f32 %v248, %v1290
        %v1403 = vmul.f32 %v249, %v1290
        %v1404 = vmul.f32 %v250, %v1295
        %v1405 = vmul.f32 %v251, %v1295
        %v1406 = vmul.f32 %v252, %v1300
        %v1407 = vmul.f32 %v253, %v1300
        %v1408 = vmul.f32 %v254, %v1305
        %v1409 = vmul.f32 %v255, %v1305
        %v1410 = vmul.f32 %v256, %v1310
        %v1411 = vmul.f32 %v257, %v1310
        %v1412 = vmul.f32 %v258, %v1315
        %v1413 = vmul.f32 %v259, %v1315
        %v1414 = vmul.f32 %v260, %v1320
        %v1415 = vmul.f32 %v261, %v1320
        %v1416 = vmul.f32 %v262, %v1325
        %v1417 = vmul.f32 %v263, %v1325
        %v1418 = vmul.f32 %v264, %v1330
        %v1419 = vmul.f32 %v265, %v1330
        %v1420 = vmul.f32 %v266, %v1335
        %v1421 = vmul.f32 %v267, %v1335
        %v1422 = vmul.f32 %v268, %v1340
        %v1423 = vmul.f32 %v269, %v1340
        %v1424 = vmul.f32 %v270, %v1345
        %v1425 = vmul.f32 %v271, %v1345
        %v1426 = vmul.f32 %v272, %v1350
        %v1427 = vmul.f32 %v273, %v1350
        %v1428 = vmul.f32 %v274, %v1355
        %v1429 = vmul.f32 %v275, %v1355
        %v1430 = vmul.f32 %v276, %v1360
        %v1431 = vmul.f32 %v277, %v1360
        %v1432 = vmul.f32 %v278, %v1365
        %v1433 = vmul.f32 %v279, %v1365
        %v1434 = vmul.f32 %v280, %v1370
        %v1435 = vmul.f32 %v281, %v1370
        %1436 = vst [vmem:[%s217] sm:$0xff] %v1372
        %1437 = vst [vmem:[%s217 + $0x8] sm:$0xff] %v1373
        %1438 = vst [vmem:[%s217 + $0x10] sm:$0xff] %v1374
        %1439 = vst [vmem:[%s217 + $0x18] sm:$0xff] %v1375
        %1440 = vst [vmem:[%s217 + $0x20] sm:$0xff] %v1376
        %1441 = vst [vmem:[%s217 + $0x28] sm:$0xff] %v1377
        %1442 = vst [vmem:[%s217 + $0x30] sm:$0xff] %v1378
        %1443 = vst [vmem:[%s217 + $0x38] sm:$0xff] %v1379
        %1444 = vst [vmem:[%s217 + $0x40] sm:$0xff] %v1380
        %1445 = vst [vmem:[%s217 + $0x48] sm:$0xff] %v1381
        %1446 = vst [vmem:[%s217 + $0x50] sm:$0xff] %v1382
        %1447 = vst [vmem:[%s217 + $0x58] sm:$0xff] %v1383
        %1448 = vst [vmem:[%s217 + $0x60] sm:$0xff] %v1384
        %1449 = vst [vmem:[%s217 + $0x68] sm:$0xff] %v1385
        %1450 = vst [vmem:[%s217 + $0x70] sm:$0xff] %v1386
        %1451 = vst [vmem:[%s217 + $0x78] sm:$0xff] %v1387
        %1452 = vst [vmem:[%s217 + $0x80] sm:$0xff] %v1388
        %1453 = vst [vmem:[%s217 + $0x88] sm:$0xff] %v1389
        %1454 = vst [vmem:[%s217 + $0x90] sm:$0xff] %v1390
        %1455 = vst [vmem:[%s217 + $0x98] sm:$0xff] %v1391
        %1456 = vst [vmem:[%s217 + $0xa0] sm:$0xff] %v1392
        %1457 = vst [vmem:[%s217 + $0xa8] sm:$0xff] %v1393
        %1458 = vst [vmem:[%s217 + $0xb0] sm:$0xff] %v1394
        %1459 = vst [vmem:[%s217 + $0xb8] sm:$0xff] %v1395
        %1460 = vst [vmem:[%s217 + $0xc0] sm:$0xff] %v1396
        %1461 = vst [vmem:[%s217 + $0xc8] sm:$0xff] %v1397
        %1462 = vst [vmem:[%s217 + $0xd0] sm:$0xff] %v1398
        %1463 = vst [vmem:[%s217 + $0xd8] sm:$0xff] %v1399
        %1464 = vst [vmem:[%s217 + $0xe0] sm:$0xff] %v1400
        %1465 = vst [vmem:[%s217 + $0xe8] sm:$0xff] %v1401
        %1466 = vst [vmem:[%s217 + $0xf0] sm:$0xff] %v1402
        %1467 = vst [vmem:[%s217 + $0xf8] sm:$0xff] %v1403
        %1468 = vst [vmem:[%s217 + $0x100] sm:$0xff] %v1404
        %1469 = vst [vmem:[%s217 + $0x108] sm:$0xff] %v1405
        %1470 = vst [vmem:[%s217 + $0x110] sm:$0xff] %v1406
        %1471 = vst [vmem:[%s217 + $0x118] sm:$0xff] %v1407
        %1472 = vst [vmem:[%s217 + $0x120] sm:$0xff] %v1408
        %1473 = vst [vmem:[%s217 + $0x128] sm:$0xff] %v1409
        %1474 = vst [vmem:[%s217 + $0x130] sm:$0xff] %v1410
        %1475 = vst [vmem:[%s217 + $0x138] sm:$0xff] %v1411
        %1476 = vst [vmem:[%s217 + $0x140] sm:$0xff] %v1412
        %1477 = vst [vmem:[%s217 + $0x148] sm:$0xff] %v1413
        %1478 = vst [vmem:[%s217 + $0x150] sm:$0xff] %v1414
        %1479 = vst [vmem:[%s217 + $0x158] sm:$0xff] %v1415
        %1480 = vst [vmem:[%s217 + $0x160] sm:$0xff] %v1416
        %1481 = vst [vmem:[%s217 + $0x168] sm:$0xff] %v1417
        %1482 = vst [vmem:[%s217 + $0x170] sm:$0xff] %v1418
        %1483 = vst [vmem:[%s217 + $0x178] sm:$0xff] %v1419
        %1484 = vst [vmem:[%s217 + $0x180] sm:$0xff] %v1420
        %1485 = vst [vmem:[%s217 + $0x188] sm:$0xff] %v1421
        %1486 = vst [vmem:[%s217 + $0x190] sm:$0xff] %v1422
        %1487 = vst [vmem:[%s217 + $0x198] sm:$0xff] %v1423
        %1488 = vst [vmem:[%s217 + $0x1a0] sm:$0xff] %v1424
        %1489 = vst [vmem:[%s217 + $0x1a8] sm:$0xff] %v1425
        %1490 = vst [vmem:[%s217 + $0x1b0] sm:$0xff] %v1426
        %1491 = vst [vmem:[%s217 + $0x1b8] sm:$0xff] %v1427
        %1492 = vst [vmem:[%s217 + $0x1c0] sm:$0xff] %v1428
        %1493 = vst [vmem:[%s217 + $0x1c8] sm:$0xff] %v1429
        %1494 = vst [vmem:[%s217 + $0x1d0] sm:$0xff] %v1430
        %1495 = vst [vmem:[%s217 + $0x1d8] sm:$0xff] %v1431
        %1496 = vst [vmem:[%s217 + $0x1e0] sm:$0xff] %v1432
        %1497 = vst [vmem:[%s217 + $0x1e8] sm:$0xff] %v1433
        %1498 = vst [vmem:[%s217 + $0x1f0] sm:$0xff] %v1434
        %1499 = vst [vmem:[%s217 + $0x1f8] sm:$0xff] %v1435
        %s1500 = sand.u32 %s97, 1
        %s1501 = scalar_lea.sflag [#allocation4], %s1500
        %s1502 = sand.u32 %s97, 1
        %s1503 = smul.addr %s1502, 512
        %s1504 = scalar_lea.vmem [#allocation8], %s1503
        // Predicated region
        $region45: #{tpu_custom_call.1} parent=31 // pred_check
          %p1505 = pneg %p107
        $region46: #{tpu_custom_call.1} parent=31 // pred_check_branch
          %1507 = sbr.rel (%p1505) target = $region48
        $region47: #{tpu_custom_call.1} parent=31 // pred_region
          %s1509 = ssub.s32 8192, 8192
          %1510 = vsyncadd %s1501, %s1509
          %s1511 = smul.addr %s21, 64
          %s1512 = smul.addr %s1511, 128
          %s1513 = scalar_lea.hbm %s3, %s1512
          %s1514 = sshll.u32 %s1504, 4
          %s1515 = int_to_ptr.vmem [resolvable:$true] %s1514
          %1520 = dma.vmem_to_hbm [thread:$0]  %s1515, 8192, %s1513, %s1501, 256, 256, 16
        $region48: #{tpu_custom_call.1} parent=31 // pred_fallthru
          _
      $region32: #{tpu_custom_call.1} parent=5 // pred_fallthru
        _
      %p1521 = scmp.le.s32.totalorder 2, %s16
      // Predicated region
      $region49: #{tpu_custom_call.1} parent=5 // pred_check
        %p1522 = pneg %p1521
      $region50: #{tpu_custom_call.1} parent=5 // pred_check_branch
        %1524 = sbr.rel (%p1522) target = $region52
      $region51: #{tpu_custom_call.1} parent=5 // pred_region
        %s1525 = ssub.s32 %s16, 2
        // Predicated region
        $region53: #{tpu_custom_call.1} parent=51 // pred_check
          %p1526 = pneg %p113
        $region54: #{tpu_custom_call.1} parent=51 // pred_check_branch
          %1528 = sbr.rel (%p1526) target = $region56
        $region55: #{tpu_custom_call.1} parent=51 // pred_region
          %s1529 = sand.u32 %s98, 1
          %s1530 = scalar_lea.sflag [#allocation4], %s1529
          %s1531 = sand.u32 %s98, 1
          %s1532 = smul.addr %s1531, 512
          %s1533 = scalar_lea.vmem [#allocation8], %s1532
          %1534 = dma.done %s1530, 8192
        $region56: #{tpu_custom_call.1} parent=51 // pred_fallthru
          _
      $region52: #{tpu_custom_call.1} parent=5 // pred_fallthru
        _
    $region6: #{tpu_custom_call.1} parent=1 // loop_footer
      %s20 = sadd.s32 1, %s16
    $region7: #{tpu_custom_call.1} parent=1 // loop_footer_branch
      %15 = sbr.rel target = $region3
    $region8: #{tpu_custom_call.1} parent=1 // loop_exit
      _
    %1535 = vsyncpa [#allocation3], 1
    %s1536 = scalar_lea.sflag [#allocation3], 1
    %1537 = vsyncpa %s1536, 1
    %1538 = vsyncpa [#allocation6], 1
    %1539 = vsyncpa [#allocation4], 1
    %s1540 = scalar_lea.sflag [#allocation4], 1
    %1541 = vsyncpa %s1540, 1

</llo_original>
